<compile_context>
chip_gen: v6e
topology: v6e:2x2x1
jax: 0.10.0
libtpu: 0.0.40
codegen_flags: <defaults>
</compile_context>

<pallas_src>
import functools

import jax
import jax.numpy as jnp
import numpy as np
from jax import lax
from jax.experimental import pallas as pl
from jax.experimental.pallas import tpu as pltpu

# ---- model config (small, consistent with the module's __init__) ----
VOCAB = 128
BATCH = 2
SEQ = 8
HIDDEN = 32           # hidden_size
NUM_HEADS = 4         # num_attention_heads (only used by the unused rotary)
HEAD_DIM = HIDDEN // NUM_HEADS
INTER = 64            # mlp intermediate size
RMS_EPS = 1e-5        # Llama-2 rms_norm_eps

_HIGHEST = jax.lax.Precision.HIGHEST


def rotated_first_layer_kernel(ids_ref, wa_ref, wug_ref, o_ref, *, vocab, inter):
    """Single grid step over the whole (N, H) token slab.

    ids_ref: (N, 1)        int32 flattened token ids
    wa_ref:  (VOCAB+I, H)  rows [0:VOCAB]        = E @ Q        (rotated table)
                           rows [VOCAB:VOCAB+I]  = W_down.T @ Q (folded down proj)
    wug_ref: (H, 2I)       [diag(rms_w) @ Q.T @ W_up.T | diag(rms_w) @ Q.T @ W_gate.T]
    o_ref:   (N, H)        output
    """
    n = ids_ref.shape[0]

    # Embedding gather fused in-kernel: one-hot (N, VOCAB) from an iota
    # comparison, then an MXU matmul against the already-rotated table.
    # Exact: rows of `onehot` are 0/1, so the sum just selects the table row.
    ids = ids_ref[...]                                            # (N, 1) int32
    onehot = (lax.broadcasted_iota(jnp.int32, (n, vocab), 1) == ids)
    onehot = onehot.astype(jnp.float32)                           # (N, VOCAB)
    table = wa_ref[0:vocab, :]                                    # (VOCAB, H) static slice
    h = jnp.dot(onehot, table, preferred_element_type=jnp.float32,
                precision=_HIGHEST)                               # == (E @ Q)[ids]

    # LlamaRMSNorm over the logical H=32 last dim (learned rms weight is
    # folded into wug, so only the rsqrt scale remains here).
    var = jnp.mean(h * h, axis=-1, keepdims=True)
    h = h * lax.rsqrt(var + RMS_EPS)

    # Fused up|gate projection: one lane-dense (H, 2I)=(32,128) matmul; the
    # (h @ Q.T) and rms weight are already folded into the weight. Split in-vreg.
    ug = jnp.dot(h, wug_ref[...], preferred_element_type=jnp.float32,
                 precision=_HIGHEST)                              # (N, 2I)
    up = ug[:, :inter]
    gate = ug[:, inter:]
    act = gate * jax.nn.sigmoid(gate)                             # SiLU (EUP path)

    # Down projection with the trailing @ Q folded into the weight.
    w_down = wa_ref[vocab:vocab + inter, :]                       # (I, H) static slice
    o_ref[...] = jnp.dot(act * up, w_down,
                         preferred_element_type=jnp.float32, precision=_HIGHEST)


def prepare_params(embed_table, Q, rms_w, w_up, w_gate, w_down):
    """One-time algebraic weight folding (exact for arbitrary, non-orthogonal Q).

    Returns:
      wa:  (VOCAB+I, H) = concat(E @ Q, W_down.T @ Q)
      wug: (H, 2I)      = concat(diag(rms_w) @ Q.T @ W_up.T,
                                 diag(rms_w) @ Q.T @ W_gate.T)
    """
    dot = functools.partial(jnp.dot, precision=_HIGHEST)
    rot_table = dot(embed_table, Q)                     # (VOCAB, H)
    w_up_t = rms_w[:, None] * dot(w_up, Q).T            # (H, I)
    w_gate_t = rms_w[:, None] * dot(w_gate, Q).T        # (H, I)
    w_down_t = dot(w_down.T, Q)                         # (I, H)
    wug = jnp.concatenate([w_up_t, w_gate_t], axis=1)   # (H, 2I)
    wa = jnp.concatenate([rot_table, w_down_t], axis=0) # (VOCAB+I, H)
    return wa.astype(jnp.float32), wug.astype(jnp.float32)


def rotated_first_layer(input_ids, wa, wug):
    """input_ids: (B, S) or (B, C, S) int32 -> (B[*C], S, HIDDEN) f32.

    `wa` / `wug` are the pre-folded parameters from prepare_params() (computed
    once, not per forward call).
    """
    if input_ids.ndim == 3:                    # torch module flattens (B,C,S)->(B*C,S)
        input_ids = input_ids.reshape(-1, input_ids.shape[-1])
    lead_shape = input_ids.shape

    inter = wug.shape[1] // 2
    vocab = wa.shape[0] - inter
    h = wa.shape[1]

    flat_ids = input_ids.reshape(-1, 1).astype(jnp.int32)   # (N, 1)
    n = flat_ids.shape[0]

    kernel = functools.partial(rotated_first_layer_kernel, vocab=vocab, inter=inter)

    out = pl.pallas_call(
        kernel,
        out_shape=jax.ShapeDtypeStruct((n, h), jnp.float32),
        grid_spec=pl.GridSpec(
            grid=(1,),
            in_specs=[
                pl.BlockSpec((n, 1), lambda i: (0, 0)),               # token ids
                pl.BlockSpec((vocab + inter, h), lambda i: (0, 0)),   # [E@Q ; W_down.T@Q]
                pl.BlockSpec((h, 2 * inter), lambda i: (0, 0)),       # fused up|gate weight
            ],
            out_specs=pl.BlockSpec((n, h), lambda i: (0, 0)),
        ),
        compiler_params=pltpu.CompilerParams(
            dimension_semantics=("arbitrary",)),
    )(flat_ids, wa, wug)

    return out.reshape(lead_shape + (h,))


def reference(input_ids, embed_table, Q, rms_w, w_up, w_gate, w_down):
    """Pure-JAX reference with the original (unfolded) torch op ordering."""
    if input_ids.ndim == 3:
        input_ids = input_ids.reshape(-1, input_ids.shape[-1])
    dot = functools.partial(jnp.dot, precision=_HIGHEST)
    x = jnp.take(embed_table, input_ids.reshape(-1), axis=0)
    h = dot(x, Q)
    var = jnp.mean(h * h, axis=-1, keepdims=True)
    h = h * lax.rsqrt(var + RMS_EPS) * rms_w
    h = dot(h, Q.T)
    up = dot(h, w_up.T)
    gate = dot(h, w_gate.T)
    h = (gate * jax.nn.sigmoid(gate)) * up
    h = dot(h, w_down.T)
    h = dot(h, Q)
    return h.reshape(input_ids.shape + (HIDDEN,))


if __name__ == "__main__":
    key = jax.random.PRNGKey(0)
    k_ids, k_emb, k_q, k_rms, k_up, k_gate, k_down = jax.random.split(key, 7)

    input_ids = jax.random.randint(k_ids, (BATCH, SEQ), 0, VOCAB, dtype=jnp.int32)
    embed_table = jax.random.normal(k_emb, (VOCAB, HIDDEN), dtype=jnp.float32) * 0.02
    # Q: nontrivial orthogonal rotation (default ctor uses identity; exercise
    # the rotation math with a real Q).
    q_raw = jax.random.normal(k_q, (HIDDEN, HIDDEN), dtype=jnp.float32)
    Q, _ = jnp.linalg.qr(q_raw)
    rms_w = 1.0 + 0.01 * jax.random.normal(k_rms, (HIDDEN,), dtype=jnp.float32)
    w_up = jax.random.normal(k_up, (INTER, HIDDEN), dtype=jnp.float32) * 0.05
    w_gate = jax.random.normal(k_gate, (INTER, HIDDEN), dtype=jnp.float32) * 0.05
    w_down = jax.random.normal(k_down, (HIDDEN, INTER), dtype=jnp.float32) * 0.05

    # TODO(synk): the torch forward also computes rotary cos/sin from a dummy
    # tensor but never uses them (dead code) -> intentionally not implemented.

    # One-time weight folding (hoisted out of the per-call path).
    wa, wug = prepare_params(embed_table, Q, rms_w, w_up, w_gate, w_down)
    wa, wug = jax.block_until_ready((wa, wug))

    out = rotated_first_layer(input_ids, wa, wug)
    out = jax.block_until_ready(out)

    ref = reference(input_ids, embed_table, Q, rms_w, w_up, w_gate, w_down)
    np.testing.assert_allclose(np.asarray(out), np.asarray(ref),
                               rtol=1e-4, atol=1e-4)
    print("KERNEL_OK")
</pallas_src>

<mosaic_0001>
module attributes {stable_mosaic.version = 11 : i64} {
  func.func @rotated_first_layer_kernel(%arg0: i32, %arg1: memref<16x1xi32, #tpu.memory_space<vmem>>, %arg2: memref<192x32xf32, #tpu.memory_space<vmem>>, %arg3: memref<32x128xf32, #tpu.memory_space<vmem>>, %arg4: memref<16x32xf32, #tpu.memory_space<vmem>>) attributes {dimension_semantics = [#tpu.dimension_semantics<arbitrary>], iteration_bounds = array<i64: 1>, scalar_prefetch = 0 : i64, scratch_operands = 0 : i64, tpu.core_type = #tpu.core_type<tc>, window_params = [{pipeline_mode = #tpu.pipeline_mode<synchronous>, transform_indices = @transform_0, window_bounds = array<i64: 16, 1>}, {pipeline_mode = #tpu.pipeline_mode<synchronous>, transform_indices = @transform_1, window_bounds = array<i64: 192, 32>}, {pipeline_mode = #tpu.pipeline_mode<synchronous>, transform_indices = @transform_2, window_bounds = array<i64: 32, 128>}, {pipeline_mode = #tpu.pipeline_mode<synchronous>, transform_indices = @transform_3, window_bounds = array<i64: 16, 32>}]} {
    %c0 = arith.constant 0 : index
    %c0_0 = arith.constant 0 : index
    %0 = vector.load %arg1[%c0, %c0_0] : memref<16x1xi32, #tpu.memory_space<vmem>>, vector<16x1xi32>
    %1 = tpu.iota {dimensions = array<i32: 1>} : vector<16x128xi32>
    %2 = vector.broadcast %0 : vector<16x1xi32> to vector<16x128xi32>
    %3 = arith.cmpi eq, %1, %2 : vector<16x128xi32>
    %4 = arith.extui %3 : vector<16x128xi1> to vector<16x128xi32>
    %5 = arith.sitofp %4 : vector<16x128xi32> to vector<16x128xf32>
    %c0_1 = arith.constant 0 : index
    %c0_2 = arith.constant 0 : index
    %6 = vector.load %arg2[%c0_1, %c0_2] : memref<192x32xf32, #tpu.memory_space<vmem>>, vector<128x32xf32>
    %cst = arith.constant dense<0.000000e+00> : vector<16x32xf32>
    %7 = tpu.matmul %5, %6, %cst {dimension_numbers = #tpu.dot_dimension_numbers<[1], [0], [0], [1], [0, 0, 1, 1], [], []>, precision = #tpu.contract_precision<fp32>} : vector<16x128xf32>, vector<128x32xf32>, vector<16x32xf32> -> vector<16x32xf32>
    %8 = arith.mulf %7, %7 : vector<16x32xf32>
    %cst_3 = arith.constant dense<0.000000e+00> : vector<16xf32>
    %9 = vector.multi_reduction <add>, %8, %cst_3 [1] : vector<16x32xf32> to vector<16xf32>
    %10 = vector.shape_cast %9 : vector<16xf32> to vector<16x1xf32>
    %cst_4 = arith.constant 3.200000e+01 : f32
    %11 = vector.broadcast %cst_4 : f32 to vector<16x1xf32>
    %12 = arith.divf %10, %11 : vector<16x1xf32>
    %cst_5 = arith.constant 9.99999974E-6 : f32
    %13 = vector.broadcast %cst_5 : f32 to vector<16x1xf32>
    %14 = arith.addf %12, %13 : vector<16x1xf32>
    %15 = math.rsqrt %14 : vector<16x1xf32>
    %16 = vector.broadcast %15 : vector<16x1xf32> to vector<16x32xf32>
    %17 = arith.mulf %7, %16 : vector<16x32xf32>
    %c0_6 = arith.constant 0 : index
    %c0_7 = arith.constant 0 : index
    %18 = vector.load %arg3[%c0_6, %c0_7] : memref<32x128xf32, #tpu.memory_space<vmem>>, vector<32x128xf32>
    %cst_8 = arith.constant dense<0.000000e+00> : vector<16x128xf32>
    %19 = tpu.matmul %17, %18, %cst_8 {dimension_numbers = #tpu.dot_dimension_numbers<[1], [0], [0], [1], [0, 0, 1, 1], [], []>, precision = #tpu.contract_precision<fp32>} : vector<16x32xf32>, vector<32x128xf32>, vector<16x128xf32> -> vector<16x128xf32>
    %20 = vector.extract_strided_slice %19 {offsets = [0, 0], sizes = [16, 64], strides = [1, 1]} : vector<16x128xf32> to vector<16x64xf32>
    %21 = vector.extract_strided_slice %19 {offsets = [0, 64], sizes = [16, 64], strides = [1, 1]} : vector<16x128xf32> to vector<16x64xf32>
    %22 = arith.negf %21 : vector<16x64xf32>
    %23 = math.exp %22 : vector<16x64xf32>
    %cst_9 = arith.constant 1.000000e+00 : f32
    %24 = vector.broadcast %cst_9 : f32 to vector<16x64xf32>
    %25 = arith.addf %24, %23 : vector<16x64xf32>
    %26 = arith.divf %24, %25 : vector<16x64xf32>
    %27 = arith.mulf %21, %26 : vector<16x64xf32>
    %c128 = arith.constant 128 : index
    %c0_10 = arith.constant 0 : index
    %28 = vector.load %arg2[%c128, %c0_10] : memref<192x32xf32, #tpu.memory_space<vmem>>, vector<64x32xf32>
    %29 = arith.mulf %27, %20 : vector<16x64xf32>
    %cst_11 = arith.constant dense<0.000000e+00> : vector<16x32xf32>
    %30 = tpu.matmul %29, %28, %cst_11 {dimension_numbers = #tpu.dot_dimension_numbers<[1], [0], [0], [1], [0, 0, 1, 1], [], []>, precision = #tpu.contract_precision<fp32>} : vector<16x64xf32>, vector<64x32xf32>, vector<16x32xf32> -> vector<16x32xf32>
    %c0_12 = arith.constant 0 : index
    %c0_13 = arith.constant 0 : index
    %31 = vector.load %arg4[%c0_12, %c0_13] : memref<16x32xf32, #tpu.memory_space<vmem>>, vector<16x32xf32>
    tpu.vector_store %arg4[%c0_12, %c0_13], %30 {strides = array<i32>} : memref<16x32xf32, #tpu.memory_space<vmem>>, vector<16x32xf32>,
    return
  }
  func.func @transform_0(%arg0: i32) -> (i32, i32) {
    %c0_i32 = arith.constant 0 : i32
    %c0_i32_0 = arith.constant 0 : i32
    %c0_i32_1 = arith.constant 0 : i32
    return %c0_i32, %c0_i32_0 : i32, i32
  }
  func.func @transform_1(%arg0: i32) -> (i32, i32) {
    %c0_i32 = arith.constant 0 : i32
    %c0_i32_0 = arith.constant 0 : i32
    %c0_i32_1 = arith.constant 0 : i32
    return %c0_i32, %c0_i32_0 : i32, i32
  }
  func.func @transform_2(%arg0: i32) -> (i32, i32) {
    %c0_i32 = arith.constant 0 : i32
    %c0_i32_0 = arith.constant 0 : i32
    %c0_i32_1 = arith.constant 0 : i32
    return %c0_i32, %c0_i32_0 : i32, i32
  }
  func.func @transform_3(%arg0: i32) -> (i32, i32) {
    %c0_i32 = arith.constant 0 : i32
    %c0_i32_0 = arith.constant 0 : i32
    %c0_i32_1 = arith.constant 0 : i32
    return %c0_i32, %c0_i32_0 : i32, i32
  }
}

</mosaic_0001>

<llo_original>
// kernel: tpu_custom_call.1
$region0: #{tpu_custom_call.1}
  #allocation0 [shape = 'u32[]', space=smem, size = 0x4, offset = 0x4, fixed_abs, tag = 'smem constant byte address 0x4 - core index']
  #allocation1 [shape = 'u32[144,128]{1,0:T(1,128)}', space=vmem, size = 0x12000, scoped, tag = 'internal scratch']
  %s0 = inlined_call_operand.vmem [shape: s32[16,1], index: 0, kind: input, shape index: {}]
  %s1 = inlined_call_operand.vmem [shape: f32[192,32], index: 1, kind: input, shape index: {}]
  %s2 = inlined_call_operand.vmem [shape: f32[32,128], index: 2, kind: input, shape index: {}]
  %s3 = inlined_call_operand.hbm [shape: f32[16,32], index: 3, kind: output, shape index: {}]
  %s4 = sld [smem:[#allocation0]]
  $region22: #{tpu_custom_call.1} parent=0
    _
  %s6 = ssub.s32 1, %s4
  %s7 = scalar_select 0, %s6, %s4
  $region1: #{tpu_custom_call.1} parent=0
    #allocation2 [shape = 'u8[8192]{0}', space=vmem, size = 0x2000, scoped, tag = 'output window, operand 0, single buffered']
    #allocation3 [shape = 's32[1]{0}', space=sflag, size = 0x4, scoped, tag = 'scoped memory for tpu_custom_call.1']
    %8 = vsyncpa [#allocation3], 0
    // Predicated region
    $region2: #{tpu_custom_call.1} parent=1 // pred_check
      _
    $region3: #{tpu_custom_call.1} parent=1 // pred_check_branch
      %10 = sbr.rel (0) target = $region5
    $region4: #{tpu_custom_call.1} parent=1 // pred_region
      _
    $region5: #{tpu_custom_call.1} parent=1 // pred_fallthru
      _
    // Predicated region
    $region6: #{tpu_custom_call.1} parent=1 // pred_check
      _
    $region7: #{tpu_custom_call.1} parent=1 // pred_check_branch
      %12 = sbr.rel (0) target = $region9
    $region8: #{tpu_custom_call.1} parent=1 // pred_region
      _
    $region9: #{tpu_custom_call.1} parent=1 // pred_fallthru
      _
    // Predicated region
    $region10: #{tpu_custom_call.1} parent=1 // pred_check
      _
    $region11: #{tpu_custom_call.1} parent=1 // pred_check_branch
      %14 = sbr.rel (0) target = $region13
    $region12: #{tpu_custom_call.1} parent=1 // pred_region
      _
    $region13: #{tpu_custom_call.1} parent=1 // pred_fallthru
      _
    %v15 = vld [vmem:[%s0] sm:$0xff]
    %v16 = vld [vmem:[%s0 + $0x8] sm:$0xff]
    %v17 = vlaneseq
    %v18 = vand.u32 %v17, 127
    %19 = vset.pattern.permute.xlu0 0
    %20 = vperm.xlu0 %19, %v15
    %v21 = vpop.permute.xlu0 %20
    %22 = vset.pattern.permute.xlu0 0
    %23 = vperm.xlu0 %22, %v16
    %v24 = vpop.permute.xlu0 %23
    %vm25 = vcmp.eq.s32.totalorder %v18, %v21
    %vm26 = vcmp.eq.s32.totalorder %v18, %v24
    %v27 = vsel %vm25, 1, 0
    %v28 = vsel %vm26, 1, 0
    %v29 = vcvt.s32.f32 %v27
    %v30 = vcvt.s32.f32 %v28
    %v31 = vld [vmem:[%s1] sm:$0xff]
    %v32 = vld [vmem:[%s1 + $0x8] sm:$0xff]
    %v33 = vld [vmem:[%s1 + $0x10] sm:$0xff]
    %v34 = vld [vmem:[%s1 + $0x18] sm:$0xff]
    %v35 = vld [vmem:[%s1 + $0x20] sm:$0xff]
    %v36 = vld [vmem:[%s1 + $0x28] sm:$0xff]
    %v37 = vld [vmem:[%s1 + $0x30] sm:$0xff]
    %v38 = vld [vmem:[%s1 + $0x38] sm:$0xff]
    %v39 = vld [vmem:[%s1 + $0x40] sm:$0xff]
    %v40 = vld [vmem:[%s1 + $0x48] sm:$0xff]
    %v41 = vld [vmem:[%s1 + $0x50] sm:$0xff]
    %v42 = vld [vmem:[%s1 + $0x58] sm:$0xff]
    %v43 = vld [vmem:[%s1 + $0x60] sm:$0xff]
    %v44 = vld [vmem:[%s1 + $0x68] sm:$0xff]
    %v45 = vld [vmem:[%s1 + $0x70] sm:$0xff]
    %v46 = vld [vmem:[%s1 + $0x78] sm:$0xff]
    %47 = vmatprep.subr.mxu0 0.0
    %v48 = vand.u32 %v46, 4294901760
    %49 = vmatpush1.msra.mxu0 %v48
    %50 = vmatprep.subr.mxu0 0.0
    %v51 = vand.u32 %v45, 4294901760
    %52 = vmatpush1.msra.mxu0 %v51
    %53 = vmatprep.subr.mxu0 0.0
    %v54 = vand.u32 %v44, 4294901760
    %55 = vmatpush1.msra.mxu0 %v54
    %56 = vmatprep.subr.mxu0 0.0
    %v57 = vand.u32 %v43, 4294901760
    %58 = vmatpush1.msra.mxu0 %v57
    %59 = vmatprep.subr.mxu0 0.0
    %v60 = vand.u32 %v42, 4294901760
    %61 = vmatpush1.msra.mxu0 %v60
    %62 = vmatprep.subr.mxu0 0.0
    %v63 = vand.u32 %v41, 4294901760
    %64 = vmatpush1.msra.mxu0 %v63
    %65 = vmatprep.subr.mxu0 0.0
    %v66 = vand.u32 %v40, 4294901760
    %67 = vmatpush1.msra.mxu0 %v66
    %68 = vmatprep.subr.mxu0 0.0
    %v69 = vand.u32 %v39, 4294901760
    %70 = vmatpush1.msra.mxu0 %v69
    %71 = vmatprep.subr.mxu0 0.0
    %v72 = vand.u32 %v38, 4294901760
    %73 = vmatpush1.msra.mxu0 %v72
    %74 = vmatprep.subr.mxu0 0.0
    %v75 = vand.u32 %v37, 4294901760
    %76 = vmatpush1.msra.mxu0 %v75
    %77 = vmatprep.subr.mxu0 0.0
    %v78 = vand.u32 %v36, 4294901760
    %79 = vmatpush1.msra.mxu0 %v78
    %80 = vmatprep.subr.mxu0 0.0
    %v81 = vand.u32 %v35, 4294901760
    %82 = vmatpush1.msra.mxu0 %v81
    %83 = vmatprep.subr.mxu0 0.0
    %v84 = vand.u32 %v34, 4294901760
    %85 = vmatpush1.msra.mxu0 %v84
    %86 = vmatprep.subr.mxu0 0.0
    %v87 = vand.u32 %v33, 4294901760
    %88 = vmatpush1.msra.mxu0 %v87
    %89 = vmatprep.subr.mxu0 0.0
    %v90 = vand.u32 %v32, 4294901760
    %91 = vmatpush1.msra.mxu0 %v90
    %92 = vmatprep.subr.mxu0 0.0
    %v93 = vand.u32 %v31, 4294901760
    %94 = vmatpush1.msra.mxu0 %v93
    %95 = vmatprep.subr.mxu0 0.0
    %96 = vmatpush2.msra.mxu0 0.0
    %97 = vmatprep.subr.mxu0 0.0
    %98 = vmatpush2.msra.mxu0 0.0
    %99 = vmatprep.subr.mxu0 0.0
    %100 = vmatpush2.msra.mxu0 0.0
    %101 = vmatprep.subr.mxu0 0.0
    %102 = vmatpush2.msra.mxu0 0.0
    %103 = vmatprep.subr.mxu0 0.0
    %104 = vmatpush2.msra.mxu0 0.0
    %105 = vmatprep.subr.mxu0 0.0
    %106 = vmatpush2.msra.mxu0 0.0
    %107 = vmatprep.subr.mxu0 0.0
    %108 = vmatpush2.msra.mxu0 0.0
    %109 = vmatprep.subr.mxu0 0.0
    %110 = vmatpush2.msra.mxu0 0.0
    %111 = vmatprep.subr.mxu0 0.0
    %112 = vmatpush2.msra.mxu0 0.0
    %113 = vmatprep.subr.mxu0 0.0
    %114 = vmatpush2.msra.mxu0 0.0
    %115 = vmatprep.subr.mxu0 0.0
    %116 = vmatpush2.msra.mxu0 0.0
    %117 = vmatprep.subr.mxu0 0.0
    %118 = vmatpush2.msra.mxu0 0.0
    %119 = vmatprep.subr.mxu0 0.0
    %120 = vmatpush2.msra.mxu0 0.0
    %121 = vmatprep.subr.mxu0 0.0
    %122 = vmatpush2.msra.mxu0 0.0
    %123 = vmatprep.subr.mxu0 0.0
    %124 = vmatpush2.msra.mxu0 0.0
    %125 = vmatprep.subr.mxu0 0.0
    %126 = vmatpush2.msra.mxu0 0.0
    %127 = vmatprep.mubr.f32.mxu0 0.0
    %v128 = vand.u32 %v29, 4294901760
    %v129 = vsub.f32 %v29, %v128
    %v130 = vand.u32 %v129, 4294901760
    %v131 = vsub.f32 %v129, %v130
    %v132 = vand.u32 %v131, 4294901760
    %133 = vmatmul.mubr.f32.gmra.mxu0 %v132
    %v134 = vpop.f32.mrf.mxu0
    %v135 = vadd.f32 0.0, %v134
    %v136 = vpop.f32.mrf.mxu0
    %137 = vmatprep.mubr.f32.mxu0 0.0
    %v138 = vand.u32 %v30, 4294901760
    %v139 = vsub.f32 %v30, %v138
    %v140 = vand.u32 %v139, 4294901760
    %v141 = vsub.f32 %v139, %v140
    %v142 = vand.u32 %v141, 4294901760
    %143 = vmatmul.mubr.f32.gmra.mxu0 %v142
    %v144 = vpop.f32.mrf.mxu0
    %v145 = vadd.f32 0.0, %v144
    %v146 = vpop.f32.mrf.mxu0
    %147 = vdwg.mxu0
    %148 = vmatprep.subr.mxu0 0.0
    %v149 = vand.u32 %v46, 4294901760
    %v150 = vsub.f32 %v46, %v149
    %v151 = vand.u32 %v150, 4294901760
    %v152 = vsub.f32 %v150, %v151
    %v153 = vand.u32 %v152, 4294901760
    %154 = vmatpush1.msra.mxu0 %v153
    %155 = vmatprep.subr.mxu0 0.0
    %v156 = vand.u32 %v45, 4294901760
    %v157 = vsub.f32 %v45, %v156
    %v158 = vand.u32 %v157, 4294901760
    %v159 = vsub.f32 %v157, %v158
    %v160 = vand.u32 %v159, 4294901760
    %161 = vmatpush1.msra.mxu0 %v160
    %162 = vmatprep.subr.mxu0 0.0
    %v163 = vand.u32 %v44, 4294901760
    %v164 = vsub.f32 %v44, %v163
    %v165 = vand.u32 %v164, 4294901760
    %v166 = vsub.f32 %v164, %v165
    %v167 = vand.u32 %v166, 4294901760
    %168 = vmatpush1.msra.mxu0 %v167
    %169 = vmatprep.subr.mxu0 0.0
    %v170 = vand.u32 %v43, 4294901760
    %v171 = vsub.f32 %v43, %v170
    %v172 = vand.u32 %v171, 4294901760
    %v173 = vsub.f32 %v171, %v172
    %v174 = vand.u32 %v173, 4294901760
    %175 = vmatpush1.msra.mxu0 %v174
    %176 = vmatprep.subr.mxu0 0.0
    %v177 = vand.u32 %v42, 4294901760
    %v178 = vsub.f32 %v42, %v177
    %v179 = vand.u32 %v178, 4294901760
    %v180 = vsub.f32 %v178, %v179
    %v181 = vand.u32 %v180, 4294901760
    %182 = vmatpush1.msra.mxu0 %v181
    %183 = vmatprep.subr.mxu0 0.0
    %v184 = vand.u32 %v41, 4294901760
    %v185 = vsub.f32 %v41, %v184
    %v186 = vand.u32 %v185, 4294901760
    %v187 = vsub.f32 %v185, %v186
    %v188 = vand.u32 %v187, 4294901760
    %189 = vmatpush1.msra.mxu0 %v188
    %190 = vmatprep.subr.mxu0 0.0
    %v191 = vand.u32 %v40, 4294901760
    %v192 = vsub.f32 %v40, %v191
    %v193 = vand.u32 %v192, 4294901760
    %v194 = vsub.f32 %v192, %v193
    %v195 = vand.u32 %v194, 4294901760
    %196 = vmatpush1.msra.mxu0 %v195
    %197 = vmatprep.subr.mxu0 0.0
    %v198 = vand.u32 %v39, 4294901760
    %v199 = vsub.f32 %v39, %v198
    %v200 = vand.u32 %v199, 4294901760
    %v201 = vsub.f32 %v199, %v200
    %v202 = vand.u32 %v201, 4294901760
    %203 = vmatpush1.msra.mxu0 %v202
    %204 = vmatprep.subr.mxu0 0.0
    %v205 = vand.u32 %v38, 4294901760
    %v206 = vsub.f32 %v38, %v205
    %v207 = vand.u32 %v206, 4294901760
    %v208 = vsub.f32 %v206, %v207
    %v209 = vand.u32 %v208, 4294901760
    %210 = vmatpush1.msra.mxu0 %v209
    %211 = vmatprep.subr.mxu0 0.0
    %v212 = vand.u32 %v37, 4294901760
    %v213 = vsub.f32 %v37, %v212
    %v214 = vand.u32 %v213, 4294901760
    %v215 = vsub.f32 %v213, %v214
    %v216 = vand.u32 %v215, 4294901760
    %217 = vmatpush1.msra.mxu0 %v216
    %218 = vmatprep.subr.mxu0 0.0
    %v219 = vand.u32 %v36, 4294901760
    %v220 = vsub.f32 %v36, %v219
    %v221 = vand.u32 %v220, 4294901760
    %v222 = vsub.f32 %v220, %v221
    %v223 = vand.u32 %v222, 4294901760
    %224 = vmatpush1.msra.mxu0 %v223
    %225 = vmatprep.subr.mxu0 0.0
    %v226 = vand.u32 %v35, 4294901760
    %v227 = vsub.f32 %v35, %v226
    %v228 = vand.u32 %v227, 4294901760
    %v229 = vsub.f32 %v227, %v228
    %v230 = vand.u32 %v229, 4294901760
    %231 = vmatpush1.msra.mxu0 %v230
    %232 = vmatprep.subr.mxu0 0.0
    %v233 = vand.u32 %v34, 4294901760
    %v234 = vsub.f32 %v34, %v233
    %v235 = vand.u32 %v234, 4294901760
    %v236 = vsub.f32 %v234, %v235
    %v237 = vand.u32 %v236, 4294901760
    %238 = vmatpush1.msra.mxu0 %v237
    %239 = vmatprep.subr.mxu0 0.0
    %v240 = vand.u32 %v33, 4294901760
    %v241 = vsub.f32 %v33, %v240
    %v242 = vand.u32 %v241, 4294901760
    %v243 = vsub.f32 %v241, %v242
    %v244 = vand.u32 %v243, 4294901760
    %245 = vmatpush1.msra.mxu0 %v244
    %246 = vmatprep.subr.mxu0 0.0
    %v247 = vand.u32 %v32, 4294901760
    %v248 = vsub.f32 %v32, %v247
    %v249 = vand.u32 %v248, 4294901760
    %v250 = vsub.f32 %v248, %v249
    %v251 = vand.u32 %v250, 4294901760
    %252 = vmatpush1.msra.mxu0 %v251
    %253 = vmatprep.subr.mxu0 0.0
    %v254 = vand.u32 %v31, 4294901760
    %v255 = vsub.f32 %v31, %v254
    %v256 = vand.u32 %v255, 4294901760
    %v257 = vsub.f32 %v255, %v256
    %v258 = vand.u32 %v257, 4294901760
    %259 = vmatpush1.msra.mxu0 %v258
    %260 = vmatprep.subr.mxu0 0.0
    %261 = vmatpush2.msra.mxu0 0.0
    %262 = vmatprep.subr.mxu0 0.0
    %263 = vmatpush2.msra.mxu0 0.0
    %264 = vmatprep.subr.mxu0 0.0
    %265 = vmatpush2.msra.mxu0 0.0
    %266 = vmatprep.subr.mxu0 0.0
    %267 = vmatpush2.msra.mxu0 0.0
    %268 = vmatprep.subr.mxu0 0.0
    %269 = vmatpush2.msra.mxu0 0.0
    %270 = vmatprep.subr.mxu0 0.0
    %271 = vmatpush2.msra.mxu0 0.0
    %272 = vmatprep.subr.mxu0 0.0
    %273 = vmatpush2.msra.mxu0 0.0
    %274 = vmatprep.subr.mxu0 0.0
    %275 = vmatpush2.msra.mxu0 0.0
    %276 = vmatprep.subr.mxu0 0.0
    %277 = vmatpush2.msra.mxu0 0.0
    %278 = vmatprep.subr.mxu0 0.0
    %279 = vmatpush2.msra.mxu0 0.0
    %280 = vmatprep.subr.mxu0 0.0
    %281 = vmatpush2.msra.mxu0 0.0
    %282 = vmatprep.subr.mxu0 0.0
    %283 = vmatpush2.msra.mxu0 0.0
    %284 = vmatprep.subr.mxu0 0.0
    %285 = vmatpush2.msra.mxu0 0.0
    %286 = vmatprep.subr.mxu0 0.0
    %287 = vmatpush2.msra.mxu0 0.0
    %288 = vmatprep.subr.mxu0 0.0
    %289 = vmatpush2.msra.mxu0 0.0
    %290 = vmatprep.subr.mxu0 0.0
    %291 = vmatpush2.msra.mxu0 0.0
    %292 = vmatprep.mubr.f32.mxu0 0.0
    %v293 = vand.u32 %v29, 4294901760
    %294 = vmatmul.mubr.f32.gmra.mxu0 %v293
    %v295 = vpop.f32.mrf.mxu0
    %v296 = vadd.f32 %v135, %v295
    %v297 = vpop.f32.mrf.mxu0
    %298 = vmatprep.mubr.f32.mxu0 0.0
    %v299 = vand.u32 %v30, 4294901760
    %300 = vmatmul.mubr.f32.gmra.mxu0 %v299
    %v301 = vpop.f32.mrf.mxu0
    %v302 = vadd.f32 %v145, %v301
    %v303 = vpop.f32.mrf.mxu0
    %304 = vdwg.mxu0
    %305 = vmatprep.subr.mxu0 0.0
    %v306 = vand.u32 %v46, 4294901760
    %v307 = vsub.f32 %v46, %v306
    %308 = vmatpush1.msra.mxu0 %v307
    %309 = vmatprep.subr.mxu0 0.0
    %v310 = vand.u32 %v45, 4294901760
    %v311 = vsub.f32 %v45, %v310
    %312 = vmatpush1.msra.mxu0 %v311
    %313 = vmatprep.subr.mxu0 0.0
    %v314 = vand.u32 %v44, 4294901760
    %v315 = vsub.f32 %v44, %v314
    %316 = vmatpush1.msra.mxu0 %v315
    %317 = vmatprep.subr.mxu0 0.0
    %v318 = vand.u32 %v43, 4294901760
    %v319 = vsub.f32 %v43, %v318
    %320 = vmatpush1.msra.mxu0 %v319
    %321 = vmatprep.subr.mxu0 0.0
    %v322 = vand.u32 %v42, 4294901760
    %v323 = vsub.f32 %v42, %v322
    %324 = vmatpush1.msra.mxu0 %v323
    %325 = vmatprep.subr.mxu0 0.0
    %v326 = vand.u32 %v41, 4294901760
    %v327 = vsub.f32 %v41, %v326
    %328 = vmatpush1.msra.mxu0 %v327
    %329 = vmatprep.subr.mxu0 0.0
    %v330 = vand.u32 %v40, 4294901760
    %v331 = vsub.f32 %v40, %v330
    %332 = vmatpush1.msra.mxu0 %v331
    %333 = vmatprep.subr.mxu0 0.0
    %v334 = vand.u32 %v39, 4294901760
    %v335 = vsub.f32 %v39, %v334
    %336 = vmatpush1.msra.mxu0 %v335
    %337 = vmatprep.subr.mxu0 0.0
    %v338 = vand.u32 %v38, 4294901760
    %v339 = vsub.f32 %v38, %v338
    %340 = vmatpush1.msra.mxu0 %v339
    %341 = vmatprep.subr.mxu0 0.0
    %v342 = vand.u32 %v37, 4294901760
    %v343 = vsub.f32 %v37, %v342
    %344 = vmatpush1.msra.mxu0 %v343
    %345 = vmatprep.subr.mxu0 0.0
    %v346 = vand.u32 %v36, 4294901760
    %v347 = vsub.f32 %v36, %v346
    %348 = vmatpush1.msra.mxu0 %v347
    %349 = vmatprep.subr.mxu0 0.0
    %v350 = vand.u32 %v35, 4294901760
    %v351 = vsub.f32 %v35, %v350
    %352 = vmatpush1.msra.mxu0 %v351
    %353 = vmatprep.subr.mxu0 0.0
    %v354 = vand.u32 %v34, 4294901760
    %v355 = vsub.f32 %v34, %v354
    %356 = vmatpush1.msra.mxu0 %v355
    %357 = vmatprep.subr.mxu0 0.0
    %v358 = vand.u32 %v33, 4294901760
    %v359 = vsub.f32 %v33, %v358
    %360 = vmatpush1.msra.mxu0 %v359
    %361 = vmatprep.subr.mxu0 0.0
    %v362 = vand.u32 %v32, 4294901760
    %v363 = vsub.f32 %v32, %v362
    %364 = vmatpush1.msra.mxu0 %v363
    %365 = vmatprep.subr.mxu0 0.0
    %v366 = vand.u32 %v31, 4294901760
    %v367 = vsub.f32 %v31, %v366
    %368 = vmatpush1.msra.mxu0 %v367
    %369 = vmatprep.subr.mxu0 0.0
    %370 = vmatpush2.msra.mxu0 0.0
    %371 = vmatprep.subr.mxu0 0.0
    %372 = vmatpush2.msra.mxu0 0.0
    %373 = vmatprep.subr.mxu0 0.0
    %374 = vmatpush2.msra.mxu0 0.0
    %375 = vmatprep.subr.mxu0 0.0
    %376 = vmatpush2.msra.mxu0 0.0
    %377 = vmatprep.subr.mxu0 0.0
    %378 = vmatpush2.msra.mxu0 0.0
    %379 = vmatprep.subr.mxu0 0.0
    %380 = vmatpush2.msra.mxu0 0.0
    %381 = vmatprep.subr.mxu0 0.0
    %382 = vmatpush2.msra.mxu0 0.0
    %383 = vmatprep.subr.mxu0 0.0
    %384 = vmatpush2.msra.mxu0 0.0
    %385 = vmatprep.subr.mxu0 0.0
    %386 = vmatpush2.msra.mxu0 0.0
    %387 = vmatprep.subr.mxu0 0.0
    %388 = vmatpush2.msra.mxu0 0.0
    %389 = vmatprep.subr.mxu0 0.0
    %390 = vmatpush2.msra.mxu0 0.0
    %391 = vmatprep.subr.mxu0 0.0
    %392 = vmatpush2.msra.mxu0 0.0
    %393 = vmatprep.subr.mxu0 0.0
    %394 = vmatpush2.msra.mxu0 0.0
    %395 = vmatprep.subr.mxu0 0.0
    %396 = vmatpush2.msra.mxu0 0.0
    %397 = vmatprep.subr.mxu0 0.0
    %398 = vmatpush2.msra.mxu0 0.0
    %399 = vmatprep.subr.mxu0 0.0
    %400 = vmatpush2.msra.mxu0 0.0
    %401 = vmatprep.mubr.f32.mxu0 0.0
    %v402 = vand.u32 %v29, 4294901760
    %v403 = vsub.f32 %v29, %v402
    %404 = vmatmul.mubr.f32.gmra.mxu0 %v403
    %v405 = vpop.f32.mrf.mxu0
    %v406 = vadd.f32 %v296, %v405
    %v407 = vpop.f32.mrf.mxu0
    %408 = vmatprep.mubr.f32.mxu0 0.0
    %v409 = vand.u32 %v30, 4294901760
    %v410 = vsub.f32 %v30, %v409
    %411 = vmatmul.mubr.f32.gmra.mxu0 %v410
    %v412 = vpop.f32.mrf.mxu0
    %v413 = vadd.f32 %v302, %v412
    %v414 = vpop.f32.mrf.mxu0
    %415 = vdwg.mxu0
    %416 = vmatprep.subr.mxu0 0.0
    %v417 = vand.u32 %v46, 4294901760
    %418 = vmatpush1.msra.mxu0 %v417
    %419 = vmatprep.subr.mxu0 0.0
    %v420 = vand.u32 %v45, 4294901760
    %421 = vmatpush1.msra.mxu0 %v420
    %422 = vmatprep.subr.mxu0 0.0
    %v423 = vand.u32 %v44, 4294901760
    %424 = vmatpush1.msra.mxu0 %v423
    %425 = vmatprep.subr.mxu0 0.0
    %v426 = vand.u32 %v43, 4294901760
    %427 = vmatpush1.msra.mxu0 %v426
    %428 = vmatprep.subr.mxu0 0.0
    %v429 = vand.u32 %v42, 4294901760
    %430 = vmatpush1.msra.mxu0 %v429
    %431 = vmatprep.subr.mxu0 0.0
    %v432 = vand.u32 %v41, 4294901760
    %433 = vmatpush1.msra.mxu0 %v432
    %434 = vmatprep.subr.mxu0 0.0
    %v435 = vand.u32 %v40, 4294901760
    %436 = vmatpush1.msra.mxu0 %v435
    %437 = vmatprep.subr.mxu0 0.0
    %v438 = vand.u32 %v39, 4294901760
    %439 = vmatpush1.msra.mxu0 %v438
    %440 = vmatprep.subr.mxu0 0.0
    %v441 = vand.u32 %v38, 4294901760
    %442 = vmatpush1.msra.mxu0 %v441
    %443 = vmatprep.subr.mxu0 0.0
    %v444 = vand.u32 %v37, 4294901760
    %445 = vmatpush1.msra.mxu0 %v444
    %446 = vmatprep.subr.mxu0 0.0
    %v447 = vand.u32 %v36, 4294901760
    %448 = vmatpush1.msra.mxu0 %v447
    %449 = vmatprep.subr.mxu0 0.0
    %v450 = vand.u32 %v35, 4294901760
    %451 = vmatpush1.msra.mxu0 %v450
    %452 = vmatprep.subr.mxu0 0.0
    %v453 = vand.u32 %v34, 4294901760
    %454 = vmatpush1.msra.mxu0 %v453
    %455 = vmatprep.subr.mxu0 0.0
    %v456 = vand.u32 %v33, 4294901760
    %457 = vmatpush1.msra.mxu0 %v456
    %458 = vmatprep.subr.mxu0 0.0
    %v459 = vand.u32 %v32, 4294901760
    %460 = vmatpush1.msra.mxu0 %v459
    %461 = vmatprep.subr.mxu0 0.0
    %v462 = vand.u32 %v31, 4294901760
    %463 = vmatpush1.msra.mxu0 %v462
    %464 = vmatprep.subr.mxu0 0.0
    %465 = vmatpush2.msra.mxu0 0.0
    %466 = vmatprep.subr.mxu0 0.0
    %467 = vmatpush2.msra.mxu0 0.0
    %468 = vmatprep.subr.mxu0 0.0
    %469 = vmatpush2.msra.mxu0 0.0
    %470 = vmatprep.subr.mxu0 0.0
    %471 = vmatpush2.msra.mxu0 0.0
    %472 = vmatprep.subr.mxu0 0.0
    %473 = vmatpush2.msra.mxu0 0.0
    %474 = vmatprep.subr.mxu0 0.0
    %475 = vmatpush2.msra.mxu0 0.0
    %476 = vmatprep.subr.mxu0 0.0
    %477 = vmatpush2.msra.mxu0 0.0
    %478 = vmatprep.subr.mxu0 0.0
    %479 = vmatpush2.msra.mxu0 0.0
    %480 = vmatprep.subr.mxu0 0.0
    %481 = vmatpush2.msra.mxu0 0.0
    %482 = vmatprep.subr.mxu0 0.0
    %483 = vmatpush2.msra.mxu0 0.0
    %484 = vmatprep.subr.mxu0 0.0
    %485 = vmatpush2.msra.mxu0 0.0
    %486 = vmatprep.subr.mxu0 0.0
    %487 = vmatpush2.msra.mxu0 0.0
    %488 = vmatprep.subr.mxu0 0.0
    %489 = vmatpush2.msra.mxu0 0.0
    %490 = vmatprep.subr.mxu0 0.0
    %491 = vmatpush2.msra.mxu0 0.0
    %492 = vmatprep.subr.mxu0 0.0
    %493 = vmatpush2.msra.mxu0 0.0
    %494 = vmatprep.subr.mxu0 0.0
    %495 = vmatpush2.msra.mxu0 0.0
    %496 = vmatprep.mubr.f32.mxu0 0.0
    %v497 = vand.u32 %v29, 4294901760
    %v498 = vsub.f32 %v29, %v497
    %v499 = vand.u32 %v498, 4294901760
    %500 = vmatmul.mubr.f32.gmra.mxu0 %v499
    %v501 = vpop.f32.mrf.mxu0
    %v502 = vadd.f32 %v406, %v501
    %v503 = vpop.f32.mrf.mxu0
    %504 = vmatprep.mubr.f32.mxu0 0.0
    %v505 = vand.u32 %v30, 4294901760
    %v506 = vsub.f32 %v30, %v505
    %v507 = vand.u32 %v506, 4294901760
    %508 = vmatmul.mubr.f32.gmra.mxu0 %v507
    %v509 = vpop.f32.mrf.mxu0
    %v510 = vadd.f32 %v413, %v509
    %v511 = vpop.f32.mrf.mxu0
    %512 = vdwg.mxu0
    %513 = vmatprep.subr.mxu0 0.0
    %v514 = vand.u32 %v46, 4294901760
    %v515 = vsub.f32 %v46, %v514
    %v516 = vand.u32 %v515, 4294901760
    %517 = vmatpush1.msra.mxu0 %v516
    %518 = vmatprep.subr.mxu0 0.0
    %v519 = vand.u32 %v45, 4294901760
    %v520 = vsub.f32 %v45, %v519
    %v521 = vand.u32 %v520, 4294901760
    %522 = vmatpush1.msra.mxu0 %v521
    %523 = vmatprep.subr.mxu0 0.0
    %v524 = vand.u32 %v44, 4294901760
    %v525 = vsub.f32 %v44, %v524
    %v526 = vand.u32 %v525, 4294901760
    %527 = vmatpush1.msra.mxu0 %v526
    %528 = vmatprep.subr.mxu0 0.0
    %v529 = vand.u32 %v43, 4294901760
    %v530 = vsub.f32 %v43, %v529
    %v531 = vand.u32 %v530, 4294901760
    %532 = vmatpush1.msra.mxu0 %v531
    %533 = vmatprep.subr.mxu0 0.0
    %v534 = vand.u32 %v42, 4294901760
    %v535 = vsub.f32 %v42, %v534
    %v536 = vand.u32 %v535, 4294901760
    %537 = vmatpush1.msra.mxu0 %v536
    %538 = vmatprep.subr.mxu0 0.0
    %v539 = vand.u32 %v41, 4294901760
    %v540 = vsub.f32 %v41, %v539
    %v541 = vand.u32 %v540, 4294901760
    %542 = vmatpush1.msra.mxu0 %v541
    %543 = vmatprep.subr.mxu0 0.0
    %v544 = vand.u32 %v40, 4294901760
    %v545 = vsub.f32 %v40, %v544
    %v546 = vand.u32 %v545, 4294901760
    %547 = vmatpush1.msra.mxu0 %v546
    %548 = vmatprep.subr.mxu0 0.0
    %v549 = vand.u32 %v39, 4294901760
    %v550 = vsub.f32 %v39, %v549
    %v551 = vand.u32 %v550, 4294901760
    %552 = vmatpush1.msra.mxu0 %v551
    %553 = vmatprep.subr.mxu0 0.0
    %v554 = vand.u32 %v38, 4294901760
    %v555 = vsub.f32 %v38, %v554
    %v556 = vand.u32 %v555, 4294901760
    %557 = vmatpush1.msra.mxu0 %v556
    %558 = vmatprep.subr.mxu0 0.0
    %v559 = vand.u32 %v37, 4294901760
    %v560 = vsub.f32 %v37, %v559
    %v561 = vand.u32 %v560, 4294901760
    %562 = vmatpush1.msra.mxu0 %v561
    %563 = vmatprep.subr.mxu0 0.0
    %v564 = vand.u32 %v36, 4294901760
    %v565 = vsub.f32 %v36, %v564
    %v566 = vand.u32 %v565, 4294901760
    %567 = vmatpush1.msra.mxu0 %v566
    %568 = vmatprep.subr.mxu0 0.0
    %v569 = vand.u32 %v35, 4294901760
    %v570 = vsub.f32 %v35, %v569
    %v571 = vand.u32 %v570, 4294901760
    %572 = vmatpush1.msra.mxu0 %v571
    %573 = vmatprep.subr.mxu0 0.0
    %v574 = vand.u32 %v34, 4294901760
    %v575 = vsub.f32 %v34, %v574
    %v576 = vand.u32 %v575, 4294901760
    %577 = vmatpush1.msra.mxu0 %v576
    %578 = vmatprep.subr.mxu0 0.0
    %v579 = vand.u32 %v33, 4294901760
    %v580 = vsub.f32 %v33, %v579
    %v581 = vand.u32 %v580, 4294901760
    %582 = vmatpush1.msra.mxu0 %v581
    %583 = vmatprep.subr.mxu0 0.0
    %v584 = vand.u32 %v32, 4294901760
    %v585 = vsub.f32 %v32, %v584
    %v586 = vand.u32 %v585, 4294901760
    %587 = vmatpush1.msra.mxu0 %v586
    %588 = vmatprep.subr.mxu0 0.0
    %v589 = vand.u32 %v31, 4294901760
    %v590 = vsub.f32 %v31, %v589
    %v591 = vand.u32 %v590, 4294901760
    %592 = vmatpush1.msra.mxu0 %v591
    %593 = vmatprep.subr.mxu0 0.0
    %594 = vmatpush2.msra.mxu0 0.0
    %595 = vmatprep.subr.mxu0 0.0
    %596 = vmatpush2.msra.mxu0 0.0
    %597 = vmatprep.subr.mxu0 0.0
    %598 = vmatpush2.msra.mxu0 0.0
    %599 = vmatprep.subr.mxu0 0.0
    %600 = vmatpush2.msra.mxu0 0.0
    %601 = vmatprep.subr.mxu0 0.0
    %602 = vmatpush2.msra.mxu0 0.0
    %603 = vmatprep.subr.mxu0 0.0
    %604 = vmatpush2.msra.mxu0 0.0
    %605 = vmatprep.subr.mxu0 0.0
    %606 = vmatpush2.msra.mxu0 0.0
    %607 = vmatprep.subr.mxu0 0.0
    %608 = vmatpush2.msra.mxu0 0.0
    %609 = vmatprep.subr.mxu0 0.0
    %610 = vmatpush2.msra.mxu0 0.0
    %611 = vmatprep.subr.mxu0 0.0
    %612 = vmatpush2.msra.mxu0 0.0
    %613 = vmatprep.subr.mxu0 0.0
    %614 = vmatpush2.msra.mxu0 0.0
    %615 = vmatprep.subr.mxu0 0.0
    %616 = vmatpush2.msra.mxu0 0.0
    %617 = vmatprep.subr.mxu0 0.0
    %618 = vmatpush2.msra.mxu0 0.0
    %619 = vmatprep.subr.mxu0 0.0
    %620 = vmatpush2.msra.mxu0 0.0
    %621 = vmatprep.subr.mxu0 0.0
    %622 = vmatpush2.msra.mxu0 0.0
    %623 = vmatprep.subr.mxu0 0.0
    %624 = vmatpush2.msra.mxu0 0.0
    %625 = vmatprep.mubr.f32.mxu0 0.0
    %v626 = vand.u32 %v29, 4294901760
    %627 = vmatmul.mubr.f32.gmra.mxu0 %v626
    %v628 = vpop.f32.mrf.mxu0
    %v629 = vadd.f32 %v502, %v628
    %v630 = vpop.f32.mrf.mxu0
    %631 = vmatprep.mubr.f32.mxu0 0.0
    %v632 = vand.u32 %v30, 4294901760
    %633 = vmatmul.mubr.f32.gmra.mxu0 %v632
    %v634 = vpop.f32.mrf.mxu0
    %v635 = vadd.f32 %v510, %v634
    %v636 = vpop.f32.mrf.mxu0
    %637 = vdwg.mxu0
    %638 = vmatprep.subr.mxu0 0.0
    %v639 = vand.u32 %v46, 4294901760
    %640 = vmatpush1.msra.mxu0 %v639
    %641 = vmatprep.subr.mxu0 0.0
    %v642 = vand.u32 %v45, 4294901760
    %643 = vmatpush1.msra.mxu0 %v642
    %644 = vmatprep.subr.mxu0 0.0
    %v645 = vand.u32 %v44, 4294901760
    %646 = vmatpush1.msra.mxu0 %v645
    %647 = vmatprep.subr.mxu0 0.0
    %v648 = vand.u32 %v43, 4294901760
    %649 = vmatpush1.msra.mxu0 %v648
    %650 = vmatprep.subr.mxu0 0.0
    %v651 = vand.u32 %v42, 4294901760
    %652 = vmatpush1.msra.mxu0 %v651
    %653 = vmatprep.subr.mxu0 0.0
    %v654 = vand.u32 %v41, 4294901760
    %655 = vmatpush1.msra.mxu0 %v654
    %656 = vmatprep.subr.mxu0 0.0
    %v657 = vand.u32 %v40, 4294901760
    %658 = vmatpush1.msra.mxu0 %v657
    %659 = vmatprep.subr.mxu0 0.0
    %v660 = vand.u32 %v39, 4294901760
    %661 = vmatpush1.msra.mxu0 %v660
    %662 = vmatprep.subr.mxu0 0.0
    %v663 = vand.u32 %v38, 4294901760
    %664 = vmatpush1.msra.mxu0 %v663
    %665 = vmatprep.subr.mxu0 0.0
    %v666 = vand.u32 %v37, 4294901760
    %667 = vmatpush1.msra.mxu0 %v666
    %668 = vmatprep.subr.mxu0 0.0
    %v669 = vand.u32 %v36, 4294901760
    %670 = vmatpush1.msra.mxu0 %v669
    %671 = vmatprep.subr.mxu0 0.0
    %v672 = vand.u32 %v35, 4294901760
    %673 = vmatpush1.msra.mxu0 %v672
    %674 = vmatprep.subr.mxu0 0.0
    %v675 = vand.u32 %v34, 4294901760
    %676 = vmatpush1.msra.mxu0 %v675
    %677 = vmatprep.subr.mxu0 0.0
    %v678 = vand.u32 %v33, 4294901760
    %679 = vmatpush1.msra.mxu0 %v678
    %680 = vmatprep.subr.mxu0 0.0
    %v681 = vand.u32 %v32, 4294901760
    %682 = vmatpush1.msra.mxu0 %v681
    %683 = vmatprep.subr.mxu0 0.0
    %v684 = vand.u32 %v31, 4294901760
    %685 = vmatpush1.msra.mxu0 %v684
    %686 = vmatprep.subr.mxu0 0.0
    %687 = vmatpush2.msra.mxu0 0.0
    %688 = vmatprep.subr.mxu0 0.0
    %689 = vmatpush2.msra.mxu0 0.0
    %690 = vmatprep.subr.mxu0 0.0
    %691 = vmatpush2.msra.mxu0 0.0
    %692 = vmatprep.subr.mxu0 0.0
    %693 = vmatpush2.msra.mxu0 0.0
    %694 = vmatprep.subr.mxu0 0.0
    %695 = vmatpush2.msra.mxu0 0.0
    %696 = vmatprep.subr.mxu0 0.0
    %697 = vmatpush2.msra.mxu0 0.0
    %698 = vmatprep.subr.mxu0 0.0
    %699 = vmatpush2.msra.mxu0 0.0
    %700 = vmatprep.subr.mxu0 0.0
    %701 = vmatpush2.msra.mxu0 0.0
    %702 = vmatprep.subr.mxu0 0.0
    %703 = vmatpush2.msra.mxu0 0.0
    %704 = vmatprep.subr.mxu0 0.0
    %705 = vmatpush2.msra.mxu0 0.0
    %706 = vmatprep.subr.mxu0 0.0
    %707 = vmatpush2.msra.mxu0 0.0
    %708 = vmatprep.subr.mxu0 0.0
    %709 = vmatpush2.msra.mxu0 0.0
    %710 = vmatprep.subr.mxu0 0.0
    %711 = vmatpush2.msra.mxu0 0.0
    %712 = vmatprep.subr.mxu0 0.0
    %713 = vmatpush2.msra.mxu0 0.0
    %714 = vmatprep.subr.mxu0 0.0
    %715 = vmatpush2.msra.mxu0 0.0
    %716 = vmatprep.subr.mxu0 0.0
    %717 = vmatpush2.msra.mxu0 0.0
    %718 = vmatprep.mubr.f32.mxu0 0.0
    %v719 = vand.u32 %v29, 4294901760
    %720 = vmatmul.mubr.f32.gmra.mxu0 %v719
    %v721 = vpop.f32.mrf.mxu0
    %v722 = vadd.f32 %v629, %v721
    %v723 = vpop.f32.mrf.mxu0
    %724 = vmatprep.mubr.f32.mxu0 0.0
    %v725 = vand.u32 %v30, 4294901760
    %726 = vmatmul.mubr.f32.gmra.mxu0 %v725
    %v727 = vpop.f32.mrf.mxu0
    %v728 = vadd.f32 %v635, %v727
    %v729 = vpop.f32.mrf.mxu0
    %730 = vdwg.mxu0
    %v731 = vmul.f32 %v722, %v722
    %v732 = vmul.f32 %v728, %v728
    %vm733 = vcmask 261120
    %v734 = vsel %vm733, %v731, 0.0
    %735 = vadd.xlane.f32.xlu0 %v734
    %v736 = vpop.xlane.xlu0 %735
    %v737 = vsel %vm733, %v732, 0.0
    %738 = vadd.xlane.f32.xlu0 %v737
    %v739 = vpop.xlane.xlu0 %738
    %v740 = vrcp.pop 32.0
    %v741 = vmul.f32 %v736, %v740
    %v742 = vmul.f32 %v739, %v740
    %v743 = vadd.f32 %v741, 1e-05
    %v744 = vadd.f32 %v742, 1e-05
    %v745 = vrsqrt.pop %v743
    %v746 = vrsqrt.pop %v744
    %v747 = vmul.f32 %v722, %v745
    %v748 = vmul.f32 %v728, %v746
    %v749 = vld [vmem:[%s2] sm:$0xff]
    %v750 = vld [vmem:[%s2 + $0x8] sm:$0xff]
    %v751 = vld [vmem:[%s2 + $0x10] sm:$0xff]
    %v752 = vld [vmem:[%s2 + $0x18] sm:$0xff]
    %v754 = vsel %vm733, %v747, 0
    %v757 = vsel %vm733, %v748, 0
    %759 = vmatprep.subr.mxu0 0.0
    %760 = vmatpush1.msra.mxu0 0.0
    %761 = vmatprep.subr.mxu0 0.0
    %762 = vmatpush1.msra.mxu0 0.0
    %763 = vmatprep.subr.mxu0 0.0
    %764 = vmatpush1.msra.mxu0 0.0
    %765 = vmatprep.subr.mxu0 0.0
    %766 = vmatpush1.msra.mxu0 0.0
    %767 = vmatprep.subr.mxu0 0.0
    %768 = vmatpush1.msra.mxu0 0.0
    %769 = vmatprep.subr.mxu0 0.0
    %770 = vmatpush1.msra.mxu0 0.0
    %771 = vmatprep.subr.mxu0 0.0
    %772 = vmatpush1.msra.mxu0 0.0
    %773 = vmatprep.subr.mxu0 0.0
    %774 = vmatpush1.msra.mxu0 0.0
    %775 = vmatprep.subr.mxu0 0.0
    %776 = vmatpush1.msra.mxu0 0.0
    %777 = vmatprep.subr.mxu0 0.0
    %778 = vmatpush1.msra.mxu0 0.0
    %779 = vmatprep.subr.mxu0 0.0
    %780 = vmatpush1.msra.mxu0 0.0
    %781 = vmatprep.subr.mxu0 0.0
    %782 = vmatpush1.msra.mxu0 0.0
    %783 = vmatprep.subr.mxu0 0.0
    %v784 = vand.u32 %v752, 4294901760
    %785 = vmatpush1.msra.mxu0 %v784
    %786 = vmatprep.subr.mxu0 0.0
    %v787 = vand.u32 %v751, 4294901760
    %788 = vmatpush1.msra.mxu0 %v787
    %789 = vmatprep.subr.mxu0 0.0
    %v790 = vand.u32 %v750, 4294901760
    %791 = vmatpush1.msra.mxu0 %v790
    %792 = vmatprep.subr.mxu0 0.0
    %v793 = vand.u32 %v749, 4294901760
    %794 = vmatpush1.msra.mxu0 %v793
    %795 = vmatprep.subr.mxu0 0.0
    %796 = vmatpush2.msra.mxu0 0.0
    %797 = vmatprep.subr.mxu0 0.0
    %798 = vmatpush2.msra.mxu0 0.0
    %799 = vmatprep.subr.mxu0 0.0
    %800 = vmatpush2.msra.mxu0 0.0
    %801 = vmatprep.subr.mxu0 0.0
    %802 = vmatpush2.msra.mxu0 0.0
    %803 = vmatprep.subr.mxu0 0.0
    %804 = vmatpush2.msra.mxu0 0.0
    %805 = vmatprep.subr.mxu0 0.0
    %806 = vmatpush2.msra.mxu0 0.0
    %807 = vmatprep.subr.mxu0 0.0
    %808 = vmatpush2.msra.mxu0 0.0
    %809 = vmatprep.subr.mxu0 0.0
    %810 = vmatpush2.msra.mxu0 0.0
    %811 = vmatprep.subr.mxu0 0.0
    %812 = vmatpush2.msra.mxu0 0.0
    %813 = vmatprep.subr.mxu0 0.0
    %814 = vmatpush2.msra.mxu0 0.0
    %815 = vmatprep.subr.mxu0 0.0
    %816 = vmatpush2.msra.mxu0 0.0
    %817 = vmatprep.subr.mxu0 0.0
    %818 = vmatpush2.msra.mxu0 0.0
    %819 = vmatprep.subr.mxu0 0.0
    %820 = vmatpush2.msra.mxu0 0.0
    %821 = vmatprep.subr.mxu0 0.0
    %822 = vmatpush2.msra.mxu0 0.0
    %823 = vmatprep.subr.mxu0 0.0
    %824 = vmatpush2.msra.mxu0 0.0
    %825 = vmatprep.subr.mxu0 0.0
    %826 = vmatpush2.msra.mxu0 0.0
    %827 = vmatprep.mubr.f32.mxu0 0.0
    %v828 = vand.u32 %v754, 4294901760
    %v829 = vsub.f32 %v754, %v828
    %v830 = vand.u32 %v829, 4294901760
    %v831 = vsub.f32 %v829, %v830
    %v832 = vand.u32 %v831, 4294901760
    %833 = vmatmul.mubr.f32.gmra.mxu0 %v832
    %v834 = vpop.f32.mrf.mxu0
    %v835 = vadd.f32 0.0, %v834
    %v836 = vpop.f32.mrf.mxu0
    %837 = vmatprep.mubr.f32.mxu0 0.0
    %v838 = vand.u32 %v757, 4294901760
    %v839 = vsub.f32 %v757, %v838
    %v840 = vand.u32 %v839, 4294901760
    %v841 = vsub.f32 %v839, %v840
    %v842 = vand.u32 %v841, 4294901760
    %843 = vmatmul.mubr.f32.gmra.mxu0 %v842
    %v844 = vpop.f32.mrf.mxu0
    %v845 = vadd.f32 0.0, %v844
    %v846 = vpop.f32.mrf.mxu0
    %847 = vdwg.mxu0
    %848 = vmatprep.subr.mxu0 0.0
    %849 = vmatpush1.msra.mxu0 0.0
    %850 = vmatprep.subr.mxu0 0.0
    %851 = vmatpush1.msra.mxu0 0.0
    %852 = vmatprep.subr.mxu0 0.0
    %853 = vmatpush1.msra.mxu0 0.0
    %854 = vmatprep.subr.mxu0 0.0
    %855 = vmatpush1.msra.mxu0 0.0
    %856 = vmatprep.subr.mxu0 0.0
    %857 = vmatpush1.msra.mxu0 0.0
    %858 = vmatprep.subr.mxu0 0.0
    %859 = vmatpush1.msra.mxu0 0.0
    %860 = vmatprep.subr.mxu0 0.0
    %861 = vmatpush1.msra.mxu0 0.0
    %862 = vmatprep.subr.mxu0 0.0
    %863 = vmatpush1.msra.mxu0 0.0
    %864 = vmatprep.subr.mxu0 0.0
    %865 = vmatpush1.msra.mxu0 0.0
    %866 = vmatprep.subr.mxu0 0.0
    %867 = vmatpush1.msra.mxu0 0.0
    %868 = vmatprep.subr.mxu0 0.0
    %869 = vmatpush1.msra.mxu0 0.0
    %870 = vmatprep.subr.mxu0 0.0
    %871 = vmatpush1.msra.mxu0 0.0
    %872 = vmatprep.subr.mxu0 0.0
    %v873 = vand.u32 %v752, 4294901760
    %v874 = vsub.f32 %v752, %v873
    %v875 = vand.u32 %v874, 4294901760
    %v876 = vsub.f32 %v874, %v875
    %v877 = vand.u32 %v876, 4294901760
    %878 = vmatpush1.msra.mxu0 %v877
    %879 = vmatprep.subr.mxu0 0.0
    %v880 = vand.u32 %v751, 4294901760
    %v881 = vsub.f32 %v751, %v880
    %v882 = vand.u32 %v881, 4294901760
    %v883 = vsub.f32 %v881, %v882
    %v884 = vand.u32 %v883, 4294901760
    %885 = vmatpush1.msra.mxu0 %v884
    %886 = vmatprep.subr.mxu0 0.0
    %v887 = vand.u32 %v750, 4294901760
    %v888 = vsub.f32 %v750, %v887
    %v889 = vand.u32 %v888, 4294901760
    %v890 = vsub.f32 %v888, %v889
    %v891 = vand.u32 %v890, 4294901760
    %892 = vmatpush1.msra.mxu0 %v891
    %893 = vmatprep.subr.mxu0 0.0
    %v894 = vand.u32 %v749, 4294901760
    %v895 = vsub.f32 %v749, %v894
    %v896 = vand.u32 %v895, 4294901760
    %v897 = vsub.f32 %v895, %v896
    %v898 = vand.u32 %v897, 4294901760
    %899 = vmatpush1.msra.mxu0 %v898
    %900 = vmatprep.subr.mxu0 0.0
    %901 = vmatpush2.msra.mxu0 0.0
    %902 = vmatprep.subr.mxu0 0.0
    %903 = vmatpush2.msra.mxu0 0.0
    %904 = vmatprep.subr.mxu0 0.0
    %905 = vmatpush2.msra.mxu0 0.0
    %906 = vmatprep.subr.mxu0 0.0
    %907 = vmatpush2.msra.mxu0 0.0
    %908 = vmatprep.subr.mxu0 0.0
    %909 = vmatpush2.msra.mxu0 0.0
    %910 = vmatprep.subr.mxu0 0.0
    %911 = vmatpush2.msra.mxu0 0.0
    %912 = vmatprep.subr.mxu0 0.0
    %913 = vmatpush2.msra.mxu0 0.0
    %914 = vmatprep.subr.mxu0 0.0
    %915 = vmatpush2.msra.mxu0 0.0
    %916 = vmatprep.subr.mxu0 0.0
    %917 = vmatpush2.msra.mxu0 0.0
    %918 = vmatprep.subr.mxu0 0.0
    %919 = vmatpush2.msra.mxu0 0.0
    %920 = vmatprep.subr.mxu0 0.0
    %921 = vmatpush2.msra.mxu0 0.0
    %922 = vmatprep.subr.mxu0 0.0
    %923 = vmatpush2.msra.mxu0 0.0
    %924 = vmatprep.subr.mxu0 0.0
    %925 = vmatpush2.msra.mxu0 0.0
    %926 = vmatprep.subr.mxu0 0.0
    %927 = vmatpush2.msra.mxu0 0.0
    %928 = vmatprep.subr.mxu0 0.0
    %929 = vmatpush2.msra.mxu0 0.0
    %930 = vmatprep.subr.mxu0 0.0
    %931 = vmatpush2.msra.mxu0 0.0
    %932 = vmatprep.mubr.f32.mxu0 0.0
    %v933 = vand.u32 %v754, 4294901760
    %934 = vmatmul.mubr.f32.gmra.mxu0 %v933
    %v935 = vpop.f32.mrf.mxu0
    %v936 = vadd.f32 %v835, %v935
    %v937 = vpop.f32.mrf.mxu0
    %938 = vmatprep.mubr.f32.mxu0 0.0
    %v939 = vand.u32 %v757, 4294901760
    %940 = vmatmul.mubr.f32.gmra.mxu0 %v939
    %v941 = vpop.f32.mrf.mxu0
    %v942 = vadd.f32 %v845, %v941
    %v943 = vpop.f32.mrf.mxu0
    %944 = vdwg.mxu0
    %945 = vmatprep.subr.mxu0 0.0
    %946 = vmatpush1.msra.mxu0 0.0
    %947 = vmatprep.subr.mxu0 0.0
    %948 = vmatpush1.msra.mxu0 0.0
    %949 = vmatprep.subr.mxu0 0.0
    %950 = vmatpush1.msra.mxu0 0.0
    %951 = vmatprep.subr.mxu0 0.0
    %952 = vmatpush1.msra.mxu0 0.0
    %953 = vmatprep.subr.mxu0 0.0
    %954 = vmatpush1.msra.mxu0 0.0
    %955 = vmatprep.subr.mxu0 0.0
    %956 = vmatpush1.msra.mxu0 0.0
    %957 = vmatprep.subr.mxu0 0.0
    %958 = vmatpush1.msra.mxu0 0.0
    %959 = vmatprep.subr.mxu0 0.0
    %960 = vmatpush1.msra.mxu0 0.0
    %961 = vmatprep.subr.mxu0 0.0
    %962 = vmatpush1.msra.mxu0 0.0
    %963 = vmatprep.subr.mxu0 0.0
    %964 = vmatpush1.msra.mxu0 0.0
    %965 = vmatprep.subr.mxu0 0.0
    %966 = vmatpush1.msra.mxu0 0.0
    %967 = vmatprep.subr.mxu0 0.0
    %968 = vmatpush1.msra.mxu0 0.0
    %969 = vmatprep.subr.mxu0 0.0
    %v970 = vand.u32 %v752, 4294901760
    %v971 = vsub.f32 %v752, %v970
    %972 = vmatpush1.msra.mxu0 %v971
    %973 = vmatprep.subr.mxu0 0.0
    %v974 = vand.u32 %v751, 4294901760
    %v975 = vsub.f32 %v751, %v974
    %976 = vmatpush1.msra.mxu0 %v975
    %977 = vmatprep.subr.mxu0 0.0
    %v978 = vand.u32 %v750, 4294901760
    %v979 = vsub.f32 %v750, %v978
    %980 = vmatpush1.msra.mxu0 %v979
    %981 = vmatprep.subr.mxu0 0.0
    %v982 = vand.u32 %v749, 4294901760
    %v983 = vsub.f32 %v749, %v982
    %984 = vmatpush1.msra.mxu0 %v983
    %985 = vmatprep.subr.mxu0 0.0
    %986 = vmatpush2.msra.mxu0 0.0
    %987 = vmatprep.subr.mxu0 0.0
    %988 = vmatpush2.msra.mxu0 0.0
    %989 = vmatprep.subr.mxu0 0.0
    %990 = vmatpush2.msra.mxu0 0.0
    %991 = vmatprep.subr.mxu0 0.0
    %992 = vmatpush2.msra.mxu0 0.0
    %993 = vmatprep.subr.mxu0 0.0
    %994 = vmatpush2.msra.mxu0 0.0
    %995 = vmatprep.subr.mxu0 0.0
    %996 = vmatpush2.msra.mxu0 0.0
    %997 = vmatprep.subr.mxu0 0.0
    %998 = vmatpush2.msra.mxu0 0.0
    %999 = vmatprep.subr.mxu0 0.0
    %1000 = vmatpush2.msra.mxu0 0.0
    %1001 = vmatprep.subr.mxu0 0.0
    %1002 = vmatpush2.msra.mxu0 0.0
    %1003 = vmatprep.subr.mxu0 0.0
    %1004 = vmatpush2.msra.mxu0 0.0
    %1005 = vmatprep.subr.mxu0 0.0
    %1006 = vmatpush2.msra.mxu0 0.0
    %1007 = vmatprep.subr.mxu0 0.0
    %1008 = vmatpush2.msra.mxu0 0.0
    %1009 = vmatprep.subr.mxu0 0.0
    %1010 = vmatpush2.msra.mxu0 0.0
    %1011 = vmatprep.subr.mxu0 0.0
    %1012 = vmatpush2.msra.mxu0 0.0
    %1013 = vmatprep.subr.mxu0 0.0
    %1014 = vmatpush2.msra.mxu0 0.0
    %1015 = vmatprep.subr.mxu0 0.0
    %1016 = vmatpush2.msra.mxu0 0.0
    %1017 = vmatprep.mubr.f32.mxu0 0.0
    %v1018 = vand.u32 %v754, 4294901760
    %v1019 = vsub.f32 %v754, %v1018
    %1020 = vmatmul.mubr.f32.gmra.mxu0 %v1019
    %v1021 = vpop.f32.mrf.mxu0
    %v1022 = vadd.f32 %v936, %v1021
    %v1023 = vpop.f32.mrf.mxu0
    %1024 = vmatprep.mubr.f32.mxu0 0.0
    %v1025 = vand.u32 %v757, 4294901760
    %v1026 = vsub.f32 %v757, %v1025
    %1027 = vmatmul.mubr.f32.gmra.mxu0 %v1026
    %v1028 = vpop.f32.mrf.mxu0
    %v1029 = vadd.f32 %v942, %v1028
    %v1030 = vpop.f32.mrf.mxu0
    %1031 = vdwg.mxu0
    %1032 = vmatprep.subr.mxu0 0.0
    %1033 = vmatpush1.msra.mxu0 0.0
    %1034 = vmatprep.subr.mxu0 0.0
    %1035 = vmatpush1.msra.mxu0 0.0
    %1036 = vmatprep.subr.mxu0 0.0
    %1037 = vmatpush1.msra.mxu0 0.0
    %1038 = vmatprep.subr.mxu0 0.0
    %1039 = vmatpush1.msra.mxu0 0.0
    %1040 = vmatprep.subr.mxu0 0.0
    %1041 = vmatpush1.msra.mxu0 0.0
    %1042 = vmatprep.subr.mxu0 0.0
    %1043 = vmatpush1.msra.mxu0 0.0
    %1044 = vmatprep.subr.mxu0 0.0
    %1045 = vmatpush1.msra.mxu0 0.0
    %1046 = vmatprep.subr.mxu0 0.0
    %1047 = vmatpush1.msra.mxu0 0.0
    %1048 = vmatprep.subr.mxu0 0.0
    %1049 = vmatpush1.msra.mxu0 0.0
    %1050 = vmatprep.subr.mxu0 0.0
    %1051 = vmatpush1.msra.mxu0 0.0
    %1052 = vmatprep.subr.mxu0 0.0
    %1053 = vmatpush1.msra.mxu0 0.0
    %1054 = vmatprep.subr.mxu0 0.0
    %1055 = vmatpush1.msra.mxu0 0.0
    %1056 = vmatprep.subr.mxu0 0.0
    %v1057 = vand.u32 %v752, 4294901760
    %1058 = vmatpush1.msra.mxu0 %v1057
    %1059 = vmatprep.subr.mxu0 0.0
    %v1060 = vand.u32 %v751, 4294901760
    %1061 = vmatpush1.msra.mxu0 %v1060
    %1062 = vmatprep.subr.mxu0 0.0
    %v1063 = vand.u32 %v750, 4294901760
    %1064 = vmatpush1.msra.mxu0 %v1063
    %1065 = vmatprep.subr.mxu0 0.0
    %v1066 = vand.u32 %v749, 4294901760
    %1067 = vmatpush1.msra.mxu0 %v1066
    %1068 = vmatprep.subr.mxu0 0.0
    %1069 = vmatpush2.msra.mxu0 0.0
    %1070 = vmatprep.subr.mxu0 0.0
    %1071 = vmatpush2.msra.mxu0 0.0
    %1072 = vmatprep.subr.mxu0 0.0
    %1073 = vmatpush2.msra.mxu0 0.0
    %1074 = vmatprep.subr.mxu0 0.0
    %1075 = vmatpush2.msra.mxu0 0.0
    %1076 = vmatprep.subr.mxu0 0.0
    %1077 = vmatpush2.msra.mxu0 0.0
    %1078 = vmatprep.subr.mxu0 0.0
    %1079 = vmatpush2.msra.mxu0 0.0
    %1080 = vmatprep.subr.mxu0 0.0
    %1081 = vmatpush2.msra.mxu0 0.0
    %1082 = vmatprep.subr.mxu0 0.0
    %1083 = vmatpush2.msra.mxu0 0.0
    %1084 = vmatprep.subr.mxu0 0.0
    %1085 = vmatpush2.msra.mxu0 0.0
    %1086 = vmatprep.subr.mxu0 0.0
    %1087 = vmatpush2.msra.mxu0 0.0
    %1088 = vmatprep.subr.mxu0 0.0
    %1089 = vmatpush2.msra.mxu0 0.0
    %1090 = vmatprep.subr.mxu0 0.0
    %1091 = vmatpush2.msra.mxu0 0.0
    %1092 = vmatprep.subr.mxu0 0.0
    %1093 = vmatpush2.msra.mxu0 0.0
    %1094 = vmatprep.subr.mxu0 0.0
    %1095 = vmatpush2.msra.mxu0 0.0
    %1096 = vmatprep.subr.mxu0 0.0
    %1097 = vmatpush2.msra.mxu0 0.0
    %1098 = vmatprep.subr.mxu0 0.0
    %1099 = vmatpush2.msra.mxu0 0.0
    %1100 = vmatprep.mubr.f32.mxu0 0.0
    %v1101 = vand.u32 %v754, 4294901760
    %v1102 = vsub.f32 %v754, %v1101
    %v1103 = vand.u32 %v1102, 4294901760
    %1104 = vmatmul.mubr.f32.gmra.mxu0 %v1103
    %v1105 = vpop.f32.mrf.mxu0
    %v1106 = vadd.f32 %v1022, %v1105
    %v1107 = vpop.f32.mrf.mxu0
    %1108 = vmatprep.mubr.f32.mxu0 0.0
    %v1109 = vand.u32 %v757, 4294901760
    %v1110 = vsub.f32 %v757, %v1109
    %v1111 = vand.u32 %v1110, 4294901760
    %1112 = vmatmul.mubr.f32.gmra.mxu0 %v1111
    %v1113 = vpop.f32.mrf.mxu0
    %v1114 = vadd.f32 %v1029, %v1113
    %v1115 = vpop.f32.mrf.mxu0
    %1116 = vdwg.mxu0
    %1117 = vmatprep.subr.mxu0 0.0
    %1118 = vmatpush1.msra.mxu0 0.0
    %1119 = vmatprep.subr.mxu0 0.0
    %1120 = vmatpush1.msra.mxu0 0.0
    %1121 = vmatprep.subr.mxu0 0.0
    %1122 = vmatpush1.msra.mxu0 0.0
    %1123 = vmatprep.subr.mxu0 0.0
    %1124 = vmatpush1.msra.mxu0 0.0
    %1125 = vmatprep.subr.mxu0 0.0
    %1126 = vmatpush1.msra.mxu0 0.0
    %1127 = vmatprep.subr.mxu0 0.0
    %1128 = vmatpush1.msra.mxu0 0.0
    %1129 = vmatprep.subr.mxu0 0.0
    %1130 = vmatpush1.msra.mxu0 0.0
    %1131 = vmatprep.subr.mxu0 0.0
    %1132 = vmatpush1.msra.mxu0 0.0
    %1133 = vmatprep.subr.mxu0 0.0
    %1134 = vmatpush1.msra.mxu0 0.0
    %1135 = vmatprep.subr.mxu0 0.0
    %1136 = vmatpush1.msra.mxu0 0.0
    %1137 = vmatprep.subr.mxu0 0.0
    %1138 = vmatpush1.msra.mxu0 0.0
    %1139 = vmatprep.subr.mxu0 0.0
    %1140 = vmatpush1.msra.mxu0 0.0
    %1141 = vmatprep.subr.mxu0 0.0
    %v1142 = vand.u32 %v752, 4294901760
    %v1143 = vsub.f32 %v752, %v1142
    %v1144 = vand.u32 %v1143, 4294901760
    %1145 = vmatpush1.msra.mxu0 %v1144
    %1146 = vmatprep.subr.mxu0 0.0
    %v1147 = vand.u32 %v751, 4294901760
    %v1148 = vsub.f32 %v751, %v1147
    %v1149 = vand.u32 %v1148, 4294901760
    %1150 = vmatpush1.msra.mxu0 %v1149
    %1151 = vmatprep.subr.mxu0 0.0
    %v1152 = vand.u32 %v750, 4294901760
    %v1153 = vsub.f32 %v750, %v1152
    %v1154 = vand.u32 %v1153, 4294901760
    %1155 = vmatpush1.msra.mxu0 %v1154
    %1156 = vmatprep.subr.mxu0 0.0
    %v1157 = vand.u32 %v749, 4294901760
    %v1158 = vsub.f32 %v749, %v1157
    %v1159 = vand.u32 %v1158, 4294901760
    %1160 = vmatpush1.msra.mxu0 %v1159
    %1161 = vmatprep.subr.mxu0 0.0
    %1162 = vmatpush2.msra.mxu0 0.0
    %1163 = vmatprep.subr.mxu0 0.0
    %1164 = vmatpush2.msra.mxu0 0.0
    %1165 = vmatprep.subr.mxu0 0.0
    %1166 = vmatpush2.msra.mxu0 0.0
    %1167 = vmatprep.subr.mxu0 0.0
    %1168 = vmatpush2.msra.mxu0 0.0
    %1169 = vmatprep.subr.mxu0 0.0
    %1170 = vmatpush2.msra.mxu0 0.0
    %1171 = vmatprep.subr.mxu0 0.0
    %1172 = vmatpush2.msra.mxu0 0.0
    %1173 = vmatprep.subr.mxu0 0.0
    %1174 = vmatpush2.msra.mxu0 0.0
    %1175 = vmatprep.subr.mxu0 0.0
    %1176 = vmatpush2.msra.mxu0 0.0
    %1177 = vmatprep.subr.mxu0 0.0
    %1178 = vmatpush2.msra.mxu0 0.0
    %1179 = vmatprep.subr.mxu0 0.0
    %1180 = vmatpush2.msra.mxu0 0.0
    %1181 = vmatprep.subr.mxu0 0.0
    %1182 = vmatpush2.msra.mxu0 0.0
    %1183 = vmatprep.subr.mxu0 0.0
    %1184 = vmatpush2.msra.mxu0 0.0
    %1185 = vmatprep.subr.mxu0 0.0
    %1186 = vmatpush2.msra.mxu0 0.0
    %1187 = vmatprep.subr.mxu0 0.0
    %1188 = vmatpush2.msra.mxu0 0.0
    %1189 = vmatprep.subr.mxu0 0.0
    %1190 = vmatpush2.msra.mxu0 0.0
    %1191 = vmatprep.subr.mxu0 0.0
    %1192 = vmatpush2.msra.mxu0 0.0
    %1193 = vmatprep.mubr.f32.mxu0 0.0
    %v1194 = vand.u32 %v754, 4294901760
    %1195 = vmatmul.mubr.f32.gmra.mxu0 %v1194
    %v1196 = vpop.f32.mrf.mxu0
    %v1197 = vadd.f32 %v1106, %v1196
    %v1198 = vpop.f32.mrf.mxu0
    %1199 = vmatprep.mubr.f32.mxu0 0.0
    %v1200 = vand.u32 %v757, 4294901760
    %1201 = vmatmul.mubr.f32.gmra.mxu0 %v1200
    %v1202 = vpop.f32.mrf.mxu0
    %v1203 = vadd.f32 %v1114, %v1202
    %v1204 = vpop.f32.mrf.mxu0
    %1205 = vdwg.mxu0
    %1206 = vmatprep.subr.mxu0 0.0
    %1207 = vmatpush1.msra.mxu0 0.0
    %1208 = vmatprep.subr.mxu0 0.0
    %1209 = vmatpush1.msra.mxu0 0.0
    %1210 = vmatprep.subr.mxu0 0.0
    %1211 = vmatpush1.msra.mxu0 0.0
    %1212 = vmatprep.subr.mxu0 0.0
    %1213 = vmatpush1.msra.mxu0 0.0
    %1214 = vmatprep.subr.mxu0 0.0
    %1215 = vmatpush1.msra.mxu0 0.0
    %1216 = vmatprep.subr.mxu0 0.0
    %1217 = vmatpush1.msra.mxu0 0.0
    %1218 = vmatprep.subr.mxu0 0.0
    %1219 = vmatpush1.msra.mxu0 0.0
    %1220 = vmatprep.subr.mxu0 0.0
    %1221 = vmatpush1.msra.mxu0 0.0
    %1222 = vmatprep.subr.mxu0 0.0
    %1223 = vmatpush1.msra.mxu0 0.0
    %1224 = vmatprep.subr.mxu0 0.0
    %1225 = vmatpush1.msra.mxu0 0.0
    %1226 = vmatprep.subr.mxu0 0.0
    %1227 = vmatpush1.msra.mxu0 0.0
    %1228 = vmatprep.subr.mxu0 0.0
    %1229 = vmatpush1.msra.mxu0 0.0
    %1230 = vmatprep.subr.mxu0 0.0
    %v1231 = vand.u32 %v752, 4294901760
    %1232 = vmatpush1.msra.mxu0 %v1231
    %1233 = vmatprep.subr.mxu0 0.0
    %v1234 = vand.u32 %v751, 4294901760
    %1235 = vmatpush1.msra.mxu0 %v1234
    %1236 = vmatprep.subr.mxu0 0.0
    %v1237 = vand.u32 %v750, 4294901760
    %1238 = vmatpush1.msra.mxu0 %v1237
    %1239 = vmatprep.subr.mxu0 0.0
    %v1240 = vand.u32 %v749, 4294901760
    %1241 = vmatpush1.msra.mxu0 %v1240
    %1242 = vmatprep.subr.mxu0 0.0
    %1243 = vmatpush2.msra.mxu0 0.0
    %1244 = vmatprep.subr.mxu0 0.0
    %1245 = vmatpush2.msra.mxu0 0.0
    %1246 = vmatprep.subr.mxu0 0.0
    %1247 = vmatpush2.msra.mxu0 0.0
    %1248 = vmatprep.subr.mxu0 0.0
    %1249 = vmatpush2.msra.mxu0 0.0
    %1250 = vmatprep.subr.mxu0 0.0
    %1251 = vmatpush2.msra.mxu0 0.0
    %1252 = vmatprep.subr.mxu0 0.0
    %1253 = vmatpush2.msra.mxu0 0.0
    %1254 = vmatprep.subr.mxu0 0.0
    %1255 = vmatpush2.msra.mxu0 0.0
    %1256 = vmatprep.subr.mxu0 0.0
    %1257 = vmatpush2.msra.mxu0 0.0
    %1258 = vmatprep.subr.mxu0 0.0
    %1259 = vmatpush2.msra.mxu0 0.0
    %1260 = vmatprep.subr.mxu0 0.0
    %1261 = vmatpush2.msra.mxu0 0.0
    %1262 = vmatprep.subr.mxu0 0.0
    %1263 = vmatpush2.msra.mxu0 0.0
    %1264 = vmatprep.subr.mxu0 0.0
    %1265 = vmatpush2.msra.mxu0 0.0
    %1266 = vmatprep.subr.mxu0 0.0
    %1267 = vmatpush2.msra.mxu0 0.0
    %1268 = vmatprep.subr.mxu0 0.0
    %1269 = vmatpush2.msra.mxu0 0.0
    %1270 = vmatprep.subr.mxu0 0.0
    %1271 = vmatpush2.msra.mxu0 0.0
    %1272 = vmatprep.subr.mxu0 0.0
    %1273 = vmatpush2.msra.mxu0 0.0
    %1274 = vmatprep.mubr.f32.mxu0 0.0
    %v1275 = vand.u32 %v754, 4294901760
    %1276 = vmatmul.mubr.f32.gmra.mxu0 %v1275
    %v1277 = vpop.f32.mrf.mxu0
    %v1278 = vadd.f32 %v1197, %v1277
    %v1279 = vpop.f32.mrf.mxu0
    %1280 = vmatprep.mubr.f32.mxu0 0.0
    %v1281 = vand.u32 %v757, 4294901760
    %1282 = vmatmul.mubr.f32.gmra.mxu0 %v1281
    %v1283 = vpop.f32.mrf.mxu0
    %v1284 = vadd.f32 %v1203, %v1283
    %v1285 = vpop.f32.mrf.mxu0
    %1286 = vdwg.mxu0
    %v1287 = vxor.u32 %v1278, 2147483648
    %v1288 = vxor.u32 %v1284, 2147483648
    %v1289 = vmul.f32 %v1287, 1.442695
    %v1290 = vpow.pop %v1289
    %v1291 = vmul.f32 %v1288, 1.442695
    %v1292 = vpow.pop %v1291
    %v1293 = vadd.f32 %v1290, 1.0
    %v1294 = vadd.f32 %v1292, 1.0
    %v1295 = vrcp.pop %v1293
    %v1296 = vmul.f32 1.0, %v1295
    %v1297 = vrcp.pop %v1294
    %v1298 = vmul.f32 1.0, %v1297
    %v1299 = vmul.f32 %v1278, %v1296
    %v1300 = vmul.f32 %v1284, %v1298
    %v1301 = vld [vmem:[%s1 + $0x80] sm:$0xff]
    %v1302 = vld [vmem:[%s1 + $0x88] sm:$0xff]
    %v1303 = vld [vmem:[%s1 + $0x90] sm:$0xff]
    %v1304 = vld [vmem:[%s1 + $0x98] sm:$0xff]
    %v1305 = vld [vmem:[%s1 + $0xa0] sm:$0xff]
    %v1306 = vld [vmem:[%s1 + $0xa8] sm:$0xff]
    %v1307 = vld [vmem:[%s1 + $0xb0] sm:$0xff]
    %v1308 = vld [vmem:[%s1 + $0xb8] sm:$0xff]
    %1311 = vrot.lane.b32.xlu0 %v1278, 64
    %v1312 = vpop.permute.xlu0 %1311
    %1313 = vrot.lane.b32.xlu0 %v1284, 64
    %v1314 = vpop.permute.xlu0 %1313
    %v1317 = vmul.f32 %v1299, %v1312
    %v1318 = vmul.f32 %v1300, %v1314
    %1321 = vrot.lane.b32.xlu0 %v1317, 64
    %v1322 = vpop.permute.xlu0 %1321
    %1323 = vrot.lane.b32.xlu0 %v1318, 64
    %v1324 = vpop.permute.xlu0 %1323
    %vm1325 = vcmask 523264
    %v1326 = vsel %vm1325, %v1322, 0
    %v1328 = vsel %vm1325, %v1324, 0
    %1330 = vmatprep.subr.mxu0 0.0
    %1331 = vmatpush1.msra.mxu0 0.0
    %1332 = vmatprep.subr.mxu0 0.0
    %1333 = vmatpush1.msra.mxu0 0.0
    %1334 = vmatprep.subr.mxu0 0.0
    %1335 = vmatpush1.msra.mxu0 0.0
    %1336 = vmatprep.subr.mxu0 0.0
    %1337 = vmatpush1.msra.mxu0 0.0
    %1338 = vmatprep.subr.mxu0 0.0
    %1339 = vmatpush1.msra.mxu0 0.0
    %1340 = vmatprep.subr.mxu0 0.0
    %1341 = vmatpush1.msra.mxu0 0.0
    %1342 = vmatprep.subr.mxu0 0.0
    %1343 = vmatpush1.msra.mxu0 0.0
    %1344 = vmatprep.subr.mxu0 0.0
    %1345 = vmatpush1.msra.mxu0 0.0
    %1346 = vmatprep.subr.mxu0 0.0
    %v1347 = vand.u32 %v1308, 4294901760
    %1348 = vmatpush1.msra.mxu0 %v1347
    %1349 = vmatprep.subr.mxu0 0.0
    %v1350 = vand.u32 %v1307, 4294901760
    %1351 = vmatpush1.msra.mxu0 %v1350
    %1352 = vmatprep.subr.mxu0 0.0
    %v1353 = vand.u32 %v1306, 4294901760
    %1354 = vmatpush1.msra.mxu0 %v1353
    %1355 = vmatprep.subr.mxu0 0.0
    %v1356 = vand.u32 %v1305, 4294901760
    %1357 = vmatpush1.msra.mxu0 %v1356
    %1358 = vmatprep.subr.mxu0 0.0
    %v1359 = vand.u32 %v1304, 4294901760
    %1360 = vmatpush1.msra.mxu0 %v1359
    %1361 = vmatprep.subr.mxu0 0.0
    %v1362 = vand.u32 %v1303, 4294901760
    %1363 = vmatpush1.msra.mxu0 %v1362
    %1364 = vmatprep.subr.mxu0 0.0
    %v1365 = vand.u32 %v1302, 4294901760
    %1366 = vmatpush1.msra.mxu0 %v1365
    %1367 = vmatprep.subr.mxu0 0.0
    %v1368 = vand.u32 %v1301, 4294901760
    %1369 = vmatpush1.msra.mxu0 %v1368
    %1370 = vmatprep.subr.mxu0 0.0
    %1371 = vmatpush2.msra.mxu0 0.0
    %1372 = vmatprep.subr.mxu0 0.0
    %1373 = vmatpush2.msra.mxu0 0.0
    %1374 = vmatprep.subr.mxu0 0.0
    %1375 = vmatpush2.msra.mxu0 0.0
    %1376 = vmatprep.subr.mxu0 0.0
    %1377 = vmatpush2.msra.mxu0 0.0
    %1378 = vmatprep.subr.mxu0 0.0
    %1379 = vmatpush2.msra.mxu0 0.0
    %1380 = vmatprep.subr.mxu0 0.0
    %1381 = vmatpush2.msra.mxu0 0.0
    %1382 = vmatprep.subr.mxu0 0.0
    %1383 = vmatpush2.msra.mxu0 0.0
    %1384 = vmatprep.subr.mxu0 0.0
    %1385 = vmatpush2.msra.mxu0 0.0
    %1386 = vmatprep.subr.mxu0 0.0
    %1387 = vmatpush2.msra.mxu0 0.0
    %1388 = vmatprep.subr.mxu0 0.0
    %1389 = vmatpush2.msra.mxu0 0.0
    %1390 = vmatprep.subr.mxu0 0.0
    %1391 = vmatpush2.msra.mxu0 0.0
    %1392 = vmatprep.subr.mxu0 0.0
    %1393 = vmatpush2.msra.mxu0 0.0
    %1394 = vmatprep.subr.mxu0 0.0
    %1395 = vmatpush2.msra.mxu0 0.0
    %1396 = vmatprep.subr.mxu0 0.0
    %1397 = vmatpush2.msra.mxu0 0.0
    %1398 = vmatprep.subr.mxu0 0.0
    %1399 = vmatpush2.msra.mxu0 0.0
    %1400 = vmatprep.subr.mxu0 0.0
    %1401 = vmatpush2.msra.mxu0 0.0
    %1402 = vmatprep.mubr.f32.mxu0 0.0
    %v1403 = vand.u32 %v1326, 4294901760
    %v1404 = vsub.f32 %v1326, %v1403
    %v1405 = vand.u32 %v1404, 4294901760
    %v1406 = vsub.f32 %v1404, %v1405
    %v1407 = vand.u32 %v1406, 4294901760
    %1408 = vmatmul.mubr.f32.gmra.mxu0 %v1407
    %v1409 = vpop.f32.mrf.mxu0
    %v1410 = vadd.f32 0.0, %v1409
    %v1411 = vpop.f32.mrf.mxu0
    %1412 = vmatprep.mubr.f32.mxu0 0.0
    %v1413 = vand.u32 %v1328, 4294901760
    %v1414 = vsub.f32 %v1328, %v1413
    %v1415 = vand.u32 %v1414, 4294901760
    %v1416 = vsub.f32 %v1414, %v1415
    %v1417 = vand.u32 %v1416, 4294901760
    %1418 = vmatmul.mubr.f32.gmra.mxu0 %v1417
    %v1419 = vpop.f32.mrf.mxu0
    %v1420 = vadd.f32 0.0, %v1419
    %v1421 = vpop.f32.mrf.mxu0
    %1422 = vdwg.mxu0
    %1423 = vmatprep.subr.mxu0 0.0
    %1424 = vmatpush1.msra.mxu0 0.0
    %1425 = vmatprep.subr.mxu0 0.0
    %1426 = vmatpush1.msra.mxu0 0.0
    %1427 = vmatprep.subr.mxu0 0.0
    %1428 = vmatpush1.msra.mxu0 0.0
    %1429 = vmatprep.subr.mxu0 0.0
    %1430 = vmatpush1.msra.mxu0 0.0
    %1431 = vmatprep.subr.mxu0 0.0
    %1432 = vmatpush1.msra.mxu0 0.0
    %1433 = vmatprep.subr.mxu0 0.0
    %1434 = vmatpush1.msra.mxu0 0.0
    %1435 = vmatprep.subr.mxu0 0.0
    %1436 = vmatpush1.msra.mxu0 0.0
    %1437 = vmatprep.subr.mxu0 0.0
    %1438 = vmatpush1.msra.mxu0 0.0
    %1439 = vmatprep.subr.mxu0 0.0
    %v1440 = vand.u32 %v1308, 4294901760
    %v1441 = vsub.f32 %v1308, %v1440
    %v1442 = vand.u32 %v1441, 4294901760
    %v1443 = vsub.f32 %v1441, %v1442
    %v1444 = vand.u32 %v1443, 4294901760
    %1445 = vmatpush1.msra.mxu0 %v1444
    %1446 = vmatprep.subr.mxu0 0.0
    %v1447 = vand.u32 %v1307, 4294901760
    %v1448 = vsub.f32 %v1307, %v1447
    %v1449 = vand.u32 %v1448, 4294901760
    %v1450 = vsub.f32 %v1448, %v1449
    %v1451 = vand.u32 %v1450, 4294901760
    %1452 = vmatpush1.msra.mxu0 %v1451
    %1453 = vmatprep.subr.mxu0 0.0
    %v1454 = vand.u32 %v1306, 4294901760
    %v1455 = vsub.f32 %v1306, %v1454
    %v1456 = vand.u32 %v1455, 4294901760
    %v1457 = vsub.f32 %v1455, %v1456
    %v1458 = vand.u32 %v1457, 4294901760
    %1459 = vmatpush1.msra.mxu0 %v1458
    %1460 = vmatprep.subr.mxu0 0.0
    %v1461 = vand.u32 %v1305, 4294901760
    %v1462 = vsub.f32 %v1305, %v1461
    %v1463 = vand.u32 %v1462, 4294901760
    %v1464 = vsub.f32 %v1462, %v1463
    %v1465 = vand.u32 %v1464, 4294901760
    %1466 = vmatpush1.msra.mxu0 %v1465
    %1467 = vmatprep.subr.mxu0 0.0
    %v1468 = vand.u32 %v1304, 4294901760
    %v1469 = vsub.f32 %v1304, %v1468
    %v1470 = vand.u32 %v1469, 4294901760
    %v1471 = vsub.f32 %v1469, %v1470
    %v1472 = vand.u32 %v1471, 4294901760
    %1473 = vmatpush1.msra.mxu0 %v1472
    %1474 = vmatprep.subr.mxu0 0.0
    %v1475 = vand.u32 %v1303, 4294901760
    %v1476 = vsub.f32 %v1303, %v1475
    %v1477 = vand.u32 %v1476, 4294901760
    %v1478 = vsub.f32 %v1476, %v1477
    %v1479 = vand.u32 %v1478, 4294901760
    %1480 = vmatpush1.msra.mxu0 %v1479
    %1481 = vmatprep.subr.mxu0 0.0
    %v1482 = vand.u32 %v1302, 4294901760
    %v1483 = vsub.f32 %v1302, %v1482
    %v1484 = vand.u32 %v1483, 4294901760
    %v1485 = vsub.f32 %v1483, %v1484
    %v1486 = vand.u32 %v1485, 4294901760
    %1487 = vmatpush1.msra.mxu0 %v1486
    %1488 = vmatprep.subr.mxu0 0.0
    %v1489 = vand.u32 %v1301, 4294901760
    %v1490 = vsub.f32 %v1301, %v1489
    %v1491 = vand.u32 %v1490, 4294901760
    %v1492 = vsub.f32 %v1490, %v1491
    %v1493 = vand.u32 %v1492, 4294901760
    %1494 = vmatpush1.msra.mxu0 %v1493
    %1495 = vmatprep.subr.mxu0 0.0
    %1496 = vmatpush2.msra.mxu0 0.0
    %1497 = vmatprep.subr.mxu0 0.0
    %1498 = vmatpush2.msra.mxu0 0.0
    %1499 = vmatprep.subr.mxu0 0.0
    %1500 = vmatpush2.msra.mxu0 0.0
    %1501 = vmatprep.subr.mxu0 0.0
    %1502 = vmatpush2.msra.mxu0 0.0
    %1503 = vmatprep.subr.mxu0 0.0
    %1504 = vmatpush2.msra.mxu0 0.0
    %1505 = vmatprep.subr.mxu0 0.0
    %1506 = vmatpush2.msra.mxu0 0.0
    %1507 = vmatprep.subr.mxu0 0.0
    %1508 = vmatpush2.msra.mxu0 0.0
    %1509 = vmatprep.subr.mxu0 0.0
    %1510 = vmatpush2.msra.mxu0 0.0
    %1511 = vmatprep.subr.mxu0 0.0
    %1512 = vmatpush2.msra.mxu0 0.0
    %1513 = vmatprep.subr.mxu0 0.0
    %1514 = vmatpush2.msra.mxu0 0.0
    %1515 = vmatprep.subr.mxu0 0.0
    %1516 = vmatpush2.msra.mxu0 0.0
    %1517 = vmatprep.subr.mxu0 0.0
    %1518 = vmatpush2.msra.mxu0 0.0
    %1519 = vmatprep.subr.mxu0 0.0
    %1520 = vmatpush2.msra.mxu0 0.0
    %1521 = vmatprep.subr.mxu0 0.0
    %1522 = vmatpush2.msra.mxu0 0.0
    %1523 = vmatprep.subr.mxu0 0.0
    %1524 = vmatpush2.msra.mxu0 0.0
    %1525 = vmatprep.subr.mxu0 0.0
    %1526 = vmatpush2.msra.mxu0 0.0
    %1527 = vmatprep.mubr.f32.mxu0 0.0
    %v1528 = vand.u32 %v1326, 4294901760
    %1529 = vmatmul.mubr.f32.gmra.mxu0 %v1528
    %v1530 = vpop.f32.mrf.mxu0
    %v1531 = vadd.f32 %v1410, %v1530
    %v1532 = vpop.f32.mrf.mxu0
    %1533 = vmatprep.mubr.f32.mxu0 0.0
    %v1534 = vand.u32 %v1328, 4294901760
    %1535 = vmatmul.mubr.f32.gmra.mxu0 %v1534
    %v1536 = vpop.f32.mrf.mxu0
    %v1537 = vadd.f32 %v1420, %v1536
    %v1538 = vpop.f32.mrf.mxu0
    %1539 = vdwg.mxu0
    %1540 = vmatprep.subr.mxu0 0.0
    %1541 = vmatpush1.msra.mxu0 0.0
    %1542 = vmatprep.subr.mxu0 0.0
    %1543 = vmatpush1.msra.mxu0 0.0
    %1544 = vmatprep.subr.mxu0 0.0
    %1545 = vmatpush1.msra.mxu0 0.0
    %1546 = vmatprep.subr.mxu0 0.0
    %1547 = vmatpush1.msra.mxu0 0.0
    %1548 = vmatprep.subr.mxu0 0.0
    %1549 = vmatpush1.msra.mxu0 0.0
    %1550 = vmatprep.subr.mxu0 0.0
    %1551 = vmatpush1.msra.mxu0 0.0
    %1552 = vmatprep.subr.mxu0 0.0
    %1553 = vmatpush1.msra.mxu0 0.0
    %1554 = vmatprep.subr.mxu0 0.0
    %1555 = vmatpush1.msra.mxu0 0.0
    %1556 = vmatprep.subr.mxu0 0.0
    %v1557 = vand.u32 %v1308, 4294901760
    %v1558 = vsub.f32 %v1308, %v1557
    %1559 = vmatpush1.msra.mxu0 %v1558
    %1560 = vmatprep.subr.mxu0 0.0
    %v1561 = vand.u32 %v1307, 4294901760
    %v1562 = vsub.f32 %v1307, %v1561
    %1563 = vmatpush1.msra.mxu0 %v1562
    %1564 = vmatprep.subr.mxu0 0.0
    %v1565 = vand.u32 %v1306, 4294901760
    %v1566 = vsub.f32 %v1306, %v1565
    %1567 = vmatpush1.msra.mxu0 %v1566
    %1568 = vmatprep.subr.mxu0 0.0
    %v1569 = vand.u32 %v1305, 4294901760
    %v1570 = vsub.f32 %v1305, %v1569
    %1571 = vmatpush1.msra.mxu0 %v1570
    %1572 = vmatprep.subr.mxu0 0.0
    %v1573 = vand.u32 %v1304, 4294901760
    %v1574 = vsub.f32 %v1304, %v1573
    %1575 = vmatpush1.msra.mxu0 %v1574
    %1576 = vmatprep.subr.mxu0 0.0
    %v1577 = vand.u32 %v1303, 4294901760
    %v1578 = vsub.f32 %v1303, %v1577
    %1579 = vmatpush1.msra.mxu0 %v1578
    %1580 = vmatprep.subr.mxu0 0.0
    %v1581 = vand.u32 %v1302, 4294901760
    %v1582 = vsub.f32 %v1302, %v1581
    %1583 = vmatpush1.msra.mxu0 %v1582
    %1584 = vmatprep.subr.mxu0 0.0
    %v1585 = vand.u32 %v1301, 4294901760
    %v1586 = vsub.f32 %v1301, %v1585
    %1587 = vmatpush1.msra.mxu0 %v1586
    %1588 = vmatprep.subr.mxu0 0.0
    %1589 = vmatpush2.msra.mxu0 0.0
    %1590 = vmatprep.subr.mxu0 0.0
    %1591 = vmatpush2.msra.mxu0 0.0
    %1592 = vmatprep.subr.mxu0 0.0
    %1593 = vmatpush2.msra.mxu0 0.0
    %1594 = vmatprep.subr.mxu0 0.0
    %1595 = vmatpush2.msra.mxu0 0.0
    %1596 = vmatprep.subr.mxu0 0.0
    %1597 = vmatpush2.msra.mxu0 0.0
    %1598 = vmatprep.subr.mxu0 0.0
    %1599 = vmatpush2.msra.mxu0 0.0
    %1600 = vmatprep.subr.mxu0 0.0
    %1601 = vmatpush2.msra.mxu0 0.0
    %1602 = vmatprep.subr.mxu0 0.0
    %1603 = vmatpush2.msra.mxu0 0.0
    %1604 = vmatprep.subr.mxu0 0.0
    %1605 = vmatpush2.msra.mxu0 0.0
    %1606 = vmatprep.subr.mxu0 0.0
    %1607 = vmatpush2.msra.mxu0 0.0
    %1608 = vmatprep.subr.mxu0 0.0
    %1609 = vmatpush2.msra.mxu0 0.0
    %1610 = vmatprep.subr.mxu0 0.0
    %1611 = vmatpush2.msra.mxu0 0.0
    %1612 = vmatprep.subr.mxu0 0.0
    %1613 = vmatpush2.msra.mxu0 0.0
    %1614 = vmatprep.subr.mxu0 0.0
    %1615 = vmatpush2.msra.mxu0 0.0
    %1616 = vmatprep.subr.mxu0 0.0
    %1617 = vmatpush2.msra.mxu0 0.0
    %1618 = vmatprep.subr.mxu0 0.0
    %1619 = vmatpush2.msra.mxu0 0.0
    %1620 = vmatprep.mubr.f32.mxu0 0.0
    %v1621 = vand.u32 %v1326, 4294901760
    %v1622 = vsub.f32 %v1326, %v1621
    %1623 = vmatmul.mubr.f32.gmra.mxu0 %v1622
    %v1624 = vpop.f32.mrf.mxu0
    %v1625 = vadd.f32 %v1531, %v1624
    %v1626 = vpop.f32.mrf.mxu0
    %1627 = vmatprep.mubr.f32.mxu0 0.0
    %v1628 = vand.u32 %v1328, 4294901760
    %v1629 = vsub.f32 %v1328, %v1628
    %1630 = vmatmul.mubr.f32.gmra.mxu0 %v1629
    %v1631 = vpop.f32.mrf.mxu0
    %v1632 = vadd.f32 %v1537, %v1631
    %v1633 = vpop.f32.mrf.mxu0
    %1634 = vdwg.mxu0
    %1635 = vmatprep.subr.mxu0 0.0
    %1636 = vmatpush1.msra.mxu0 0.0
    %1637 = vmatprep.subr.mxu0 0.0
    %1638 = vmatpush1.msra.mxu0 0.0
    %1639 = vmatprep.subr.mxu0 0.0
    %1640 = vmatpush1.msra.mxu0 0.0
    %1641 = vmatprep.subr.mxu0 0.0
    %1642 = vmatpush1.msra.mxu0 0.0
    %1643 = vmatprep.subr.mxu0 0.0
    %1644 = vmatpush1.msra.mxu0 0.0
    %1645 = vmatprep.subr.mxu0 0.0
    %1646 = vmatpush1.msra.mxu0 0.0
    %1647 = vmatprep.subr.mxu0 0.0
    %1648 = vmatpush1.msra.mxu0 0.0
    %1649 = vmatprep.subr.mxu0 0.0
    %1650 = vmatpush1.msra.mxu0 0.0
    %1651 = vmatprep.subr.mxu0 0.0
    %v1652 = vand.u32 %v1308, 4294901760
    %1653 = vmatpush1.msra.mxu0 %v1652
    %1654 = vmatprep.subr.mxu0 0.0
    %v1655 = vand.u32 %v1307, 4294901760
    %1656 = vmatpush1.msra.mxu0 %v1655
    %1657 = vmatprep.subr.mxu0 0.0
    %v1658 = vand.u32 %v1306, 4294901760
    %1659 = vmatpush1.msra.mxu0 %v1658
    %1660 = vmatprep.subr.mxu0 0.0
    %v1661 = vand.u32 %v1305, 4294901760
    %1662 = vmatpush1.msra.mxu0 %v1661
    %1663 = vmatprep.subr.mxu0 0.0
    %v1664 = vand.u32 %v1304, 4294901760
    %1665 = vmatpush1.msra.mxu0 %v1664
    %1666 = vmatprep.subr.mxu0 0.0
    %v1667 = vand.u32 %v1303, 4294901760
    %1668 = vmatpush1.msra.mxu0 %v1667
    %1669 = vmatprep.subr.mxu0 0.0
    %v1670 = vand.u32 %v1302, 4294901760
    %1671 = vmatpush1.msra.mxu0 %v1670
    %1672 = vmatprep.subr.mxu0 0.0
    %v1673 = vand.u32 %v1301, 4294901760
    %1674 = vmatpush1.msra.mxu0 %v1673
    %1675 = vmatprep.subr.mxu0 0.0
    %1676 = vmatpush2.msra.mxu0 0.0
    %1677 = vmatprep.subr.mxu0 0.0
    %1678 = vmatpush2.msra.mxu0 0.0
    %1679 = vmatprep.subr.mxu0 0.0
    %1680 = vmatpush2.msra.mxu0 0.0
    %1681 = vmatprep.subr.mxu0 0.0
    %1682 = vmatpush2.msra.mxu0 0.0
    %1683 = vmatprep.subr.mxu0 0.0
    %1684 = vmatpush2.msra.mxu0 0.0
    %1685 = vmatprep.subr.mxu0 0.0
    %1686 = vmatpush2.msra.mxu0 0.0
    %1687 = vmatprep.subr.mxu0 0.0
    %1688 = vmatpush2.msra.mxu0 0.0
    %1689 = vmatprep.subr.mxu0 0.0
    %1690 = vmatpush2.msra.mxu0 0.0
    %1691 = vmatprep.subr.mxu0 0.0
    %1692 = vmatpush2.msra.mxu0 0.0
    %1693 = vmatprep.subr.mxu0 0.0
    %1694 = vmatpush2.msra.mxu0 0.0
    %1695 = vmatprep.subr.mxu0 0.0
    %1696 = vmatpush2.msra.mxu0 0.0
    %1697 = vmatprep.subr.mxu0 0.0
    %1698 = vmatpush2.msra.mxu0 0.0
    %1699 = vmatprep.subr.mxu0 0.0
    %1700 = vmatpush2.msra.mxu0 0.0
    %1701 = vmatprep.subr.mxu0 0.0
    %1702 = vmatpush2.msra.mxu0 0.0
    %1703 = vmatprep.subr.mxu0 0.0
    %1704 = vmatpush2.msra.mxu0 0.0
    %1705 = vmatprep.subr.mxu0 0.0
    %1706 = vmatpush2.msra.mxu0 0.0
    %1707 = vmatprep.mubr.f32.mxu0 0.0
    %v1708 = vand.u32 %v1326, 4294901760
    %v1709 = vsub.f32 %v1326, %v1708
    %v1710 = vand.u32 %v1709, 4294901760
    %1711 = vmatmul.mubr.f32.gmra.mxu0 %v1710
    %v1712 = vpop.f32.mrf.mxu0
    %v1713 = vadd.f32 %v1625, %v1712
    %v1714 = vpop.f32.mrf.mxu0
    %1715 = vmatprep.mubr.f32.mxu0 0.0
    %v1716 = vand.u32 %v1328, 4294901760
    %v1717 = vsub.f32 %v1328, %v1716
    %v1718 = vand.u32 %v1717, 4294901760
    %1719 = vmatmul.mubr.f32.gmra.mxu0 %v1718
    %v1720 = vpop.f32.mrf.mxu0
    %v1721 = vadd.f32 %v1632, %v1720
    %v1722 = vpop.f32.mrf.mxu0
    %1723 = vdwg.mxu0
    %1724 = vmatprep.subr.mxu0 0.0
    %1725 = vmatpush1.msra.mxu0 0.0
    %1726 = vmatprep.subr.mxu0 0.0
    %1727 = vmatpush1.msra.mxu0 0.0
    %1728 = vmatprep.subr.mxu0 0.0
    %1729 = vmatpush1.msra.mxu0 0.0
    %1730 = vmatprep.subr.mxu0 0.0
    %1731 = vmatpush1.msra.mxu0 0.0
    %1732 = vmatprep.subr.mxu0 0.0
    %1733 = vmatpush1.msra.mxu0 0.0
    %1734 = vmatprep.subr.mxu0 0.0
    %1735 = vmatpush1.msra.mxu0 0.0
    %1736 = vmatprep.subr.mxu0 0.0
    %1737 = vmatpush1.msra.mxu0 0.0
    %1738 = vmatprep.subr.mxu0 0.0
    %1739 = vmatpush1.msra.mxu0 0.0
    %1740 = vmatprep.subr.mxu0 0.0
    %v1741 = vand.u32 %v1308, 4294901760
    %v1742 = vsub.f32 %v1308, %v1741
    %v1743 = vand.u32 %v1742, 4294901760
    %1744 = vmatpush1.msra.mxu0 %v1743
    %1745 = vmatprep.subr.mxu0 0.0
    %v1746 = vand.u32 %v1307, 4294901760
    %v1747 = vsub.f32 %v1307, %v1746
    %v1748 = vand.u32 %v1747, 4294901760
    %1749 = vmatpush1.msra.mxu0 %v1748
    %1750 = vmatprep.subr.mxu0 0.0
    %v1751 = vand.u32 %v1306, 4294901760
    %v1752 = vsub.f32 %v1306, %v1751
    %v1753 = vand.u32 %v1752, 4294901760
    %1754 = vmatpush1.msra.mxu0 %v1753
    %1755 = vmatprep.subr.mxu0 0.0
    %v1756 = vand.u32 %v1305, 4294901760
    %v1757 = vsub.f32 %v1305, %v1756
    %v1758 = vand.u32 %v1757, 4294901760
    %1759 = vmatpush1.msra.mxu0 %v1758
    %1760 = vmatprep.subr.mxu0 0.0
    %v1761 = vand.u32 %v1304, 4294901760
    %v1762 = vsub.f32 %v1304, %v1761
    %v1763 = vand.u32 %v1762, 4294901760
    %1764 = vmatpush1.msra.mxu0 %v1763
    %1765 = vmatprep.subr.mxu0 0.0
    %v1766 = vand.u32 %v1303, 4294901760
    %v1767 = vsub.f32 %v1303, %v1766
    %v1768 = vand.u32 %v1767, 4294901760
    %1769 = vmatpush1.msra.mxu0 %v1768
    %1770 = vmatprep.subr.mxu0 0.0
    %v1771 = vand.u32 %v1302, 4294901760
    %v1772 = vsub.f32 %v1302, %v1771
    %v1773 = vand.u32 %v1772, 4294901760
    %1774 = vmatpush1.msra.mxu0 %v1773
    %1775 = vmatprep.subr.mxu0 0.0
    %v1776 = vand.u32 %v1301, 4294901760
    %v1777 = vsub.f32 %v1301, %v1776
    %v1778 = vand.u32 %v1777, 4294901760
    %1779 = vmatpush1.msra.mxu0 %v1778
    %1780 = vmatprep.subr.mxu0 0.0
    %1781 = vmatpush2.msra.mxu0 0.0
    %1782 = vmatprep.subr.mxu0 0.0
    %1783 = vmatpush2.msra.mxu0 0.0
    %1784 = vmatprep.subr.mxu0 0.0
    %1785 = vmatpush2.msra.mxu0 0.0
    %1786 = vmatprep.subr.mxu0 0.0
    %1787 = vmatpush2.msra.mxu0 0.0
    %1788 = vmatprep.subr.mxu0 0.0
    %1789 = vmatpush2.msra.mxu0 0.0
    %1790 = vmatprep.subr.mxu0 0.0
    %1791 = vmatpush2.msra.mxu0 0.0
    %1792 = vmatprep.subr.mxu0 0.0
    %1793 = vmatpush2.msra.mxu0 0.0
    %1794 = vmatprep.subr.mxu0 0.0
    %1795 = vmatpush2.msra.mxu0 0.0
    %1796 = vmatprep.subr.mxu0 0.0
    %1797 = vmatpush2.msra.mxu0 0.0
    %1798 = vmatprep.subr.mxu0 0.0
    %1799 = vmatpush2.msra.mxu0 0.0
    %1800 = vmatprep.subr.mxu0 0.0
    %1801 = vmatpush2.msra.mxu0 0.0
    %1802 = vmatprep.subr.mxu0 0.0
    %1803 = vmatpush2.msra.mxu0 0.0
    %1804 = vmatprep.subr.mxu0 0.0
    %1805 = vmatpush2.msra.mxu0 0.0
    %1806 = vmatprep.subr.mxu0 0.0
    %1807 = vmatpush2.msra.mxu0 0.0
    %1808 = vmatprep.subr.mxu0 0.0
    %1809 = vmatpush2.msra.mxu0 0.0
    %1810 = vmatprep.subr.mxu0 0.0
    %1811 = vmatpush2.msra.mxu0 0.0
    %1812 = vmatprep.mubr.f32.mxu0 0.0
    %v1813 = vand.u32 %v1326, 4294901760
    %1814 = vmatmul.mubr.f32.gmra.mxu0 %v1813
    %v1815 = vpop.f32.mrf.mxu0
    %v1816 = vadd.f32 %v1713, %v1815
    %v1817 = vpop.f32.mrf.mxu0
    %1818 = vmatprep.mubr.f32.mxu0 0.0
    %v1819 = vand.u32 %v1328, 4294901760
    %1820 = vmatmul.mubr.f32.gmra.mxu0 %v1819
    %v1821 = vpop.f32.mrf.mxu0
    %v1822 = vadd.f32 %v1721, %v1821
    %v1823 = vpop.f32.mrf.mxu0
    %1824 = vdwg.mxu0
    %1825 = vmatprep.subr.mxu0 0.0
    %1826 = vmatpush1.msra.mxu0 0.0
    %1827 = vmatprep.subr.mxu0 0.0
    %1828 = vmatpush1.msra.mxu0 0.0
    %1829 = vmatprep.subr.mxu0 0.0
    %1830 = vmatpush1.msra.mxu0 0.0
    %1831 = vmatprep.subr.mxu0 0.0
    %1832 = vmatpush1.msra.mxu0 0.0
    %1833 = vmatprep.subr.mxu0 0.0
    %1834 = vmatpush1.msra.mxu0 0.0
    %1835 = vmatprep.subr.mxu0 0.0
    %1836 = vmatpush1.msra.mxu0 0.0
    %1837 = vmatprep.subr.mxu0 0.0
    %1838 = vmatpush1.msra.mxu0 0.0
    %1839 = vmatprep.subr.mxu0 0.0
    %1840 = vmatpush1.msra.mxu0 0.0
    %1841 = vmatprep.subr.mxu0 0.0
    %v1842 = vand.u32 %v1308, 4294901760
    %1843 = vmatpush1.msra.mxu0 %v1842
    %1844 = vmatprep.subr.mxu0 0.0
    %v1845 = vand.u32 %v1307, 4294901760
    %1846 = vmatpush1.msra.mxu0 %v1845
    %1847 = vmatprep.subr.mxu0 0.0
    %v1848 = vand.u32 %v1306, 4294901760
    %1849 = vmatpush1.msra.mxu0 %v1848
    %1850 = vmatprep.subr.mxu0 0.0
    %v1851 = vand.u32 %v1305, 4294901760
    %1852 = vmatpush1.msra.mxu0 %v1851
    %1853 = vmatprep.subr.mxu0 0.0
    %v1854 = vand.u32 %v1304, 4294901760
    %1855 = vmatpush1.msra.mxu0 %v1854
    %1856 = vmatprep.subr.mxu0 0.0
    %v1857 = vand.u32 %v1303, 4294901760
    %1858 = vmatpush1.msra.mxu0 %v1857
    %1859 = vmatprep.subr.mxu0 0.0
    %v1860 = vand.u32 %v1302, 4294901760
    %1861 = vmatpush1.msra.mxu0 %v1860
    %1862 = vmatprep.subr.mxu0 0.0
    %v1863 = vand.u32 %v1301, 4294901760
    %1864 = vmatpush1.msra.mxu0 %v1863
    %1865 = vmatprep.subr.mxu0 0.0
    %1866 = vmatpush2.msra.mxu0 0.0
    %1867 = vmatprep.subr.mxu0 0.0
    %1868 = vmatpush2.msra.mxu0 0.0
    %1869 = vmatprep.subr.mxu0 0.0
    %1870 = vmatpush2.msra.mxu0 0.0
    %1871 = vmatprep.subr.mxu0 0.0
    %1872 = vmatpush2.msra.mxu0 0.0
    %1873 = vmatprep.subr.mxu0 0.0
    %1874 = vmatpush2.msra.mxu0 0.0
    %1875 = vmatprep.subr.mxu0 0.0
    %1876 = vmatpush2.msra.mxu0 0.0
    %1877 = vmatprep.subr.mxu0 0.0
    %1878 = vmatpush2.msra.mxu0 0.0
    %1879 = vmatprep.subr.mxu0 0.0
    %1880 = vmatpush2.msra.mxu0 0.0
    %1881 = vmatprep.subr.mxu0 0.0
    %1882 = vmatpush2.msra.mxu0 0.0
    %1883 = vmatprep.subr.mxu0 0.0
    %1884 = vmatpush2.msra.mxu0 0.0
    %1885 = vmatprep.subr.mxu0 0.0
    %1886 = vmatpush2.msra.mxu0 0.0
    %1887 = vmatprep.subr.mxu0 0.0
    %1888 = vmatpush2.msra.mxu0 0.0
    %1889 = vmatprep.subr.mxu0 0.0
    %1890 = vmatpush2.msra.mxu0 0.0
    %1891 = vmatprep.subr.mxu0 0.0
    %1892 = vmatpush2.msra.mxu0 0.0
    %1893 = vmatprep.subr.mxu0 0.0
    %1894 = vmatpush2.msra.mxu0 0.0
    %1895 = vmatprep.subr.mxu0 0.0
    %1896 = vmatpush2.msra.mxu0 0.0
    %1897 = vmatprep.mubr.f32.mxu0 0.0
    %v1898 = vand.u32 %v1326, 4294901760
    %1899 = vmatmul.mubr.f32.gmra.mxu0 %v1898
    %v1900 = vpop.f32.mrf.mxu0
    %v1901 = vadd.f32 %v1816, %v1900
    %v1902 = vpop.f32.mrf.mxu0
    %1903 = vmatprep.mubr.f32.mxu0 0.0
    %v1904 = vand.u32 %v1328, 4294901760
    %1905 = vmatmul.mubr.f32.gmra.mxu0 %v1904
    %v1906 = vpop.f32.mrf.mxu0
    %v1907 = vadd.f32 %v1822, %v1906
    %v1908 = vpop.f32.mrf.mxu0
    %1909 = vdwg.mxu0
    %1910 = vst.msk [vmem:[#allocation2] sm:$0xff] %vm733, %v1901
    %1911 = vst.msk [vmem:[#allocation2 + $0x8] sm:$0xff] %vm733, %v1907
    // Predicated region
    $region14: #{tpu_custom_call.1} parent=1 // pred_check
      _
    $region15: #{tpu_custom_call.1} parent=1 // pred_check_branch
      %1913 = sbr.rel (0) target = $region17
    $region16: #{tpu_custom_call.1} parent=1 // pred_region
      %s1915 = ssub.s32 256, 256
      %1916 = vsyncadd [#allocation3], %s1915
      %s1917 = sshll.u32 [#allocation2], 4
      %s1918 = int_to_ptr.vmem [resolvable:$true] %s1917
      %1923 = dma.vmem_to_hbm [thread:$0]  %s1918, 256, %s3, [#allocation3], 128, 128, 8
    $region17: #{tpu_custom_call.1} parent=1 // pred_fallthru
      _
    // Predicated region
    $region18: #{tpu_custom_call.1} parent=1 // pred_check
      _
    $region19: #{tpu_custom_call.1} parent=1 // pred_check_branch
      %1925 = sbr.rel (0) target = $region21
    $region20: #{tpu_custom_call.1} parent=1 // pred_region
      %1926 = dma.done [#allocation3], 256
    $region21: #{tpu_custom_call.1} parent=1 // pred_fallthru
      _
    %1927 = vsyncpa [#allocation3], 1

</llo_original>
